<compile_context>
chip_gen: v6e
topology: v6e:2x2x1
jax: 0.10.0
libtpu: 0.0.40
codegen_flags: <defaults>
</compile_context>

<pallas_src>
import functools

import jax
import jax.numpy as jnp
from jax.experimental import pallas as pl
from jax.experimental.pallas import tpu as pltpu


def _round_up(x, m):
    return (x + m - 1) // m * m


def _vmem_budget_bytes():
    """~75% of physical VMEM (96 MiB on v5e/v6e, 48 MiB on v7x)."""
    cap = 64 * 1024 * 1024  # conservative fallback (v7x physical)
    try:
        info = pltpu.get_tpu_info()
        cap = int(getattr(info, "vmem_capacity_bytes", cap))
    except Exception:
        pass
    return max(32 * 1024 * 1024, (cap * 3) // 4)


# --------------------------------------------------------------------------
# Fused single-call kernel: (A+I) resident in VMEM, read from HBM once.
#   a_ref : (n_pad, n_pad) bf16, exact 0/1 (A + I), zero rows/cols for padding
#   xs_ref: (n_pad, F)     bf16, d * X  (d = D^{-1/2}, 0 on padded rows)
#   d_ref : (n_pad, 1)     f32
# --------------------------------------------------------------------------
def _fused_kernel(a_ref, xs_ref, d_ref, w1_ref, b1_ref, w2_ref, b2_ref,
                  w3_ref, b3_ref, o_ref):
    d = d_ref[...]
    a = a_ref[...]
    # layer 1, aggregate-first:  A_hat @ X == d * ((A+I) @ (d*X))
    agg1 = jnp.dot(a, xs_ref[...], preferred_element_type=jnp.float32) * d
    h1 = jnp.maximum(
        jnp.dot(agg1, w1_ref[...], preferred_element_type=jnp.float32)
        + b1_ref[...], 0.0)
    # layer 2 feature transform, pre-scaled by d for the second aggregation
    t2 = (jnp.dot(h1, w2_ref[...], preferred_element_type=jnp.float32) * d
          ).astype(jnp.bfloat16)
    agg2 = jnp.dot(a, t2, preferred_element_type=jnp.float32) * d
    h2 = jnp.maximum(agg2 + b2_ref[...], 0.0)
    # lane-dense logits (C padded to 128; padded lanes sit at -1e30)
    logits = jnp.dot(h2, w3_ref[...], preferred_element_type=jnp.float32) + b3_ref[...]
    m = jnp.max(logits, axis=-1, keepdims=True)
    lse = m + jnp.log(jnp.sum(jnp.exp(logits - m), axis=-1, keepdims=True))
    o_ref[...] = logits - lse


# --------------------------------------------------------------------------
# Two-pass row-stripe kernels (A streamed from HBM twice), for graphs whose
# full (A+I) does not fit VMEM.  One full-width (tm, n_pad) stripe per grid
# step: no k reduction axis, no accumulator scratch.
# --------------------------------------------------------------------------
def _pass1_kernel(a_ref, xs_ref, d_ref, w1_ref, b1_ref, w2_ref, t_ref):
    agg = jnp.dot(a_ref[...], xs_ref[...],
                  preferred_element_type=jnp.float32) * d_ref[...]
    h1 = jnp.maximum(
        jnp.dot(agg, w1_ref[...], preferred_element_type=jnp.float32)
        + b1_ref[...], 0.0)
    # store d * (h1 @ W2) so pass 2 only needs the raw (A+I) aggregation
    t2 = jnp.dot(h1, w2_ref[...], preferred_element_type=jnp.float32) * d_ref[...]
    t_ref[...] = t2.astype(t_ref.dtype)


def _pass2_kernel(a_ref, t_ref, d_ref, b2_ref, w3_ref, b3_ref, o_ref):
    agg = jnp.dot(a_ref[...], t_ref[...],
                  preferred_element_type=jnp.float32) * d_ref[...]
    h2 = jnp.maximum(agg + b2_ref[...], 0.0)
    logits = jnp.dot(h2, w3_ref[...], preferred_element_type=jnp.float32) + b3_ref[...]
    m = jnp.max(logits, axis=-1, keepdims=True)
    lse = m + jnp.log(jnp.sum(jnp.exp(logits - m), axis=-1, keepdims=True))
    o_ref[...] = logits - lse


# --------------------------------------------------------------------------
# Graph-structure glue (plain JAX): exact 0/1 (A+I) in bf16 + D^{-1/2} vector.
# Repeated edges are deduplicated (scatter .set), matching the dense-A_hat
# reference and PyG's simple-graph assumption.
# --------------------------------------------------------------------------
def build_graph_operators(edge_index, num_nodes, n_pad):
    src, dst = edge_index
    self_idx = jnp.arange(num_nodes, dtype=src.dtype)
    rows = jnp.concatenate([dst, self_idx])
    cols = jnp.concatenate([src, self_idx])
    a01 = jnp.zeros((n_pad, n_pad), jnp.bfloat16).at[rows, cols].set(1.0)
    deg = jnp.sum(a01, axis=1, dtype=jnp.float32)
    d = jnp.where(deg > 0, jax.lax.rsqrt(deg), 0.0)
    return a01, d[:, None]


def _forward_impl(x, edge_index, w1, b1, w2, b2, w3, b3, force_two_pass):
    n, f = x.shape
    h2d = w1.shape[1]          # 2 * nhid
    hd = w2.shape[1]           # nhid
    c = w3.shape[1]            # num_classes
    c_pad = _round_up(c, 128)  # lane-dense output store

    n_pad = _round_up(max(n, 256), 256)
    budget = _vmem_budget_bytes()

    a01, d = build_graph_operators(edge_index, n, n_pad)
    x_p = jnp.pad(x, ((0, n_pad - n), (0, 0)))
    xs = (x_p * d).astype(jnp.bfloat16)       # d * X (0 on padded rows)

    b1r = jnp.reshape(b1, (1, h2d)).astype(jnp.float32)
    b2r = jnp.reshape(b2, (1, hd)).astype(jnp.float32)
    w3p = jnp.zeros((hd, c_pad), jnp.float32).at[:, :c].set(w3)
    b3p = jnp.full((1, c_pad), -1e30, jnp.float32).at[:, :c].set(
        jnp.reshape(b3, (1, c)))

    a_bytes = 2 * n_pad * n_pad
    skinny_bytes = n_pad * (2 * f + 2 * hd + 4 * c_pad + 4)
    fused_fits = (a_bytes + skinny_bytes + 16 * 1024 * 1024) <= budget

    # ---------------- fused path: A read from HBM exactly once ----------------
    if fused_fits and not force_two_pass:
        vmem_spec = pl.BlockSpec(memory_space=pltpu.MemorySpace.VMEM)
        out_p = pl.pallas_call(
            _fused_kernel,
            out_shape=jax.ShapeDtypeStruct((n_pad, c_pad), jnp.float32),
            in_specs=[vmem_spec] * 9,
            out_specs=vmem_spec,
            compiler_params=pltpu.CompilerParams(vmem_limit_bytes=budget),
            cost_estimate=pl.CostEstimate(
                flops=2 * n_pad * n_pad * (f + hd)
                + 2 * n_pad * (f * h2d + h2d * hd + hd * c_pad),
                transcendentals=n_pad * (c_pad + 1),
                bytes_accessed=a_bytes + 2 * n_pad * f + 4 * n_pad * c_pad,
            ),
        )(a01, xs, d, w1.astype(jnp.float32), b1r, w2.astype(jnp.float32),
          b2r, w3p, b3p)
        return out_p[:n, :c]

    # ---------------- two-pass row-stripe path ----------------
    tm = 256
    # full-width stripe, double-buffered, plus headroom for skinny operands
    while tm > 8 and 2 * (tm * n_pad * 2) + 8 * 1024 * 1024 > budget:
        tm //= 2
    grid = (n_pad // tm,)
    cparams = pltpu.CompilerParams(dimension_semantics=("parallel",),
                                   vmem_limit_bytes=budget)

    t2s = pl.pallas_call(
        _pass1_kernel,
        out_shape=jax.ShapeDtypeStruct((n_pad, hd), jnp.bfloat16),
        grid_spec=pltpu.PrefetchScalarGridSpec(
            num_scalar_prefetch=0,
            grid=grid,
            in_specs=[
                pl.BlockSpec((tm, n_pad), lambda i: (i, 0)),   # full A row-stripe
                pl.BlockSpec((n_pad, f), lambda i: (0, 0)),    # d*X   (resident)
                pl.BlockSpec((tm, 1), lambda i: (i, 0)),       # d rows
                pl.BlockSpec((f, h2d), lambda i: (0, 0)),      # W1    (resident)
                pl.BlockSpec((1, h2d), lambda i: (0, 0)),      # b1
                pl.BlockSpec((h2d, hd), lambda i: (0, 0)),     # W2
            ],
            out_specs=pl.BlockSpec((tm, hd), lambda i: (i, 0)),
        ),
        compiler_params=cparams,
        cost_estimate=pl.CostEstimate(
            flops=2 * n_pad * n_pad * f + 2 * n_pad * (f * h2d + h2d * hd),
            transcendentals=0,
            bytes_accessed=a_bytes + 2 * n_pad * f + 2 * n_pad * hd,
        ),
    )(a01, xs, d, w1.astype(jnp.float32), b1r, w2.astype(jnp.float32))

    out_p = pl.pallas_call(
        _pass2_kernel,
        out_shape=jax.ShapeDtypeStruct((n_pad, c_pad), jnp.float32),
        grid_spec=pltpu.PrefetchScalarGridSpec(
            num_scalar_prefetch=0,
            grid=grid,
            in_specs=[
                pl.BlockSpec((tm, n_pad), lambda i: (i, 0)),   # full A row-stripe
                pl.BlockSpec((n_pad, hd), lambda i: (0, 0)),   # d*T2  (resident)
                pl.BlockSpec((tm, 1), lambda i: (i, 0)),       # d rows
                pl.BlockSpec((1, hd), lambda i: (0, 0)),       # b2
                pl.BlockSpec((hd, c_pad), lambda i: (0, 0)),   # W3 (lane-padded)
                pl.BlockSpec((1, c_pad), lambda i: (0, 0)),    # b3 (lane-padded)
            ],
            out_specs=pl.BlockSpec((tm, c_pad), lambda i: (i, 0)),
        ),
        compiler_params=cparams,
        cost_estimate=pl.CostEstimate(
            flops=2 * n_pad * n_pad * hd + 2 * n_pad * hd * c_pad,
            transcendentals=n_pad * (c_pad + 1),
            bytes_accessed=a_bytes + 2 * n_pad * hd + 4 * n_pad * c_pad,
        ),
    )(a01, t2s, d, b2r, w3p, b3p)

    return out_p[:n, :c]


@functools.partial(jax.jit, static_argnames=("force_two_pass",))
def gnn_forward(x, edge_index, w1, b1, w2, b2, w3, b3, *, force_two_pass=False):
    return _forward_impl(x, edge_index, w1, b1, w2, b2, w3, b3, force_two_pass)


# --------------------------------------------------------------------------
# f32 reference (for validation only, small N)
# --------------------------------------------------------------------------
def build_normalized_adjacency(edge_index, num_nodes):
    src, dst = edge_index
    adj = jnp.zeros((num_nodes, num_nodes), jnp.float32).at[dst, src].set(1.0)
    adj = adj + jnp.eye(num_nodes, dtype=jnp.float32)
    deg = jnp.sum(adj, axis=1)
    dis = jnp.where(deg > 0, 1.0 / jnp.sqrt(deg), 0.0)
    return adj * dis[:, None] * dis[None, :]


def _reference(a_hat, x, w1, b1, w2, b2, w3, b3):
    h = jnp.maximum(a_hat @ (x @ w1) + b1, 0.0)
    h = jnp.maximum(a_hat @ (h @ w2) + b2, 0.0)
    return jax.nn.log_softmax(h @ w3 + b3, axis=-1)


if __name__ == "__main__":
    # Small config consistent with the module's __init__ (gcn, nhop=2)
    N = 256          # number of graph nodes
    F = 8            # args.num_features
    H = 16           # args.nhid
    C = 4            # args.num_classes

    key = jax.random.PRNGKey(0)
    kx, k1, k2, k3 = jax.random.split(key, 4)

    # Node features (data.x)
    x = jax.random.normal(kx, (N, F), dtype=jnp.float32)

    # edge_index: bidirectional ring graph over N nodes
    idx = jnp.arange(N, dtype=jnp.int32)
    src = jnp.concatenate([idx, (idx + 1) % N])
    dst = jnp.concatenate([(idx + 1) % N, idx])
    edge_index = jnp.stack([src, dst])

    # Deterministic parameters (GCNConv1: F -> 2H, GCNConv2: 2H -> H, Linear: H -> C)
    w1 = 0.1 * jax.random.normal(k1, (F, 2 * H), dtype=jnp.float32)
    b1 = jnp.zeros((1, 2 * H), dtype=jnp.float32)
    w2 = 0.1 * jax.random.normal(k2, (2 * H, H), dtype=jnp.float32)
    b2 = jnp.zeros((1, H), dtype=jnp.float32)
    w3 = 0.1 * jax.random.normal(k3, (H, C), dtype=jnp.float32)
    b3 = jnp.zeros((1, C), dtype=jnp.float32)

    ref = _reference(build_normalized_adjacency(edge_index, N),
                     x, w1, b1, w2, b2, w3, b3)

    # Fused path (A resident in VMEM, read from HBM once)
    out_fused = jax.block_until_ready(
        gnn_forward(x, edge_index, w1, b1, w2, b2, w3, b3))
    # Row-stripe two-pass path (used automatically when A exceeds VMEM)
    out_stripe = jax.block_until_ready(
        gnn_forward(x, edge_index, w1, b1, w2, b2, w3, b3, force_two_pass=True))

    for out in (out_fused, out_stripe):
        assert out.shape == (N, C)
        assert jnp.allclose(jnp.sum(jnp.exp(out), axis=-1), 1.0, atol=1e-4)
        assert jnp.max(jnp.abs(out - ref)) < 5e-2  # bf16 feature-stream tolerance

    print("KERNEL_OK")
</pallas_src>

<mosaic_0001>
module attributes {stable_mosaic.version = 11 : i64} {
  func.func @_fused_kernel(%arg0: memref<256x256xbf16, #tpu.memory_space<vmem>>, %arg1: memref<256x8xbf16, #tpu.memory_space<vmem>>, %arg2: memref<256x1xf32, #tpu.memory_space<vmem>>, %arg3: memref<8x32xf32, #tpu.memory_space<vmem>>, %arg4: memref<1x32xf32, #tpu.memory_space<vmem>>, %arg5: memref<32x16xf32, #tpu.memory_space<vmem>>, %arg6: memref<1x16xf32, #tpu.memory_space<vmem>>, %arg7: memref<16x128xf32, #tpu.memory_space<vmem>>, %arg8: memref<1x128xf32, #tpu.memory_space<vmem>>, %arg9: memref<256x128xf32, #tpu.memory_space<vmem>>) attributes {dimension_semantics = [], scalar_prefetch = 0 : i64, scratch_operands = 0 : i64, tpu.core_type = #tpu.core_type<tc>} {
    %c0 = arith.constant 0 : index
    %c0_0 = arith.constant 0 : index
    %0 = vector.load %arg2[%c0, %c0_0] : memref<256x1xf32, #tpu.memory_space<vmem>>, vector<256x1xf32>
    %c0_1 = arith.constant 0 : index
    %c0_2 = arith.constant 0 : index
    %1 = vector.load %arg0[%c0_1, %c0_2] : memref<256x256xbf16, #tpu.memory_space<vmem>>, vector<256x256xbf16>
    %c0_3 = arith.constant 0 : index
    %c0_4 = arith.constant 0 : index
    %2 = vector.load %arg1[%c0_3, %c0_4] : memref<256x8xbf16, #tpu.memory_space<vmem>>, vector<256x8xbf16>
    %cst = arith.constant dense<0.000000e+00> : vector<256x8xf32>
    %3 = tpu.matmul %1, %2, %cst {dimension_numbers = #tpu.dot_dimension_numbers<[1], [0], [0], [1], [0, 0, 1, 1], [], []>} : vector<256x256xbf16>, vector<256x8xbf16>, vector<256x8xf32> -> vector<256x8xf32>
    %4 = vector.broadcast %0 : vector<256x1xf32> to vector<256x8xf32>
    %5 = arith.mulf %3, %4 : vector<256x8xf32>
    %c0_5 = arith.constant 0 : index
    %c0_6 = arith.constant 0 : index
    %6 = vector.load %arg3[%c0_5, %c0_6] : memref<8x32xf32, #tpu.memory_space<vmem>>, vector<8x32xf32>
    %cst_7 = arith.constant dense<0.000000e+00> : vector<256x32xf32>
    %7 = tpu.matmul %5, %6, %cst_7 {dimension_numbers = #tpu.dot_dimension_numbers<[1], [0], [0], [1], [0, 0, 1, 1], [], []>} : vector<256x8xf32>, vector<8x32xf32>, vector<256x32xf32> -> vector<256x32xf32>
    %c0_8 = arith.constant 0 : index
    %c0_9 = arith.constant 0 : index
    %8 = vector.load %arg4[%c0_8, %c0_9] : memref<1x32xf32, #tpu.memory_space<vmem>>, vector<1x32xf32>
    %9 = vector.broadcast %8 : vector<1x32xf32> to vector<256x32xf32>
    %10 = arith.addf %7, %9 : vector<256x32xf32>
    %cst_10 = arith.constant 0.000000e+00 : f32
    %11 = vector.broadcast %cst_10 : f32 to vector<256x32xf32>
    %12 = arith.maximumf %10, %11 : vector<256x32xf32>
    %c0_11 = arith.constant 0 : index
    %c0_12 = arith.constant 0 : index
    %13 = vector.load %arg5[%c0_11, %c0_12] : memref<32x16xf32, #tpu.memory_space<vmem>>, vector<32x16xf32>
    %cst_13 = arith.constant dense<0.000000e+00> : vector<256x16xf32>
    %14 = tpu.matmul %12, %13, %cst_13 {dimension_numbers = #tpu.dot_dimension_numbers<[1], [0], [0], [1], [0, 0, 1, 1], [], []>} : vector<256x32xf32>, vector<32x16xf32>, vector<256x16xf32> -> vector<256x16xf32>
    %15 = vector.broadcast %0 : vector<256x1xf32> to vector<256x16xf32>
    %16 = arith.mulf %14, %15 : vector<256x16xf32>
    %17 = arith.truncf %16 : vector<256x16xf32> to vector<256x16xbf16>
    %cst_14 = arith.constant dense<0.000000e+00> : vector<256x16xf32>
    %18 = tpu.matmul %1, %17, %cst_14 {dimension_numbers = #tpu.dot_dimension_numbers<[1], [0], [0], [1], [0, 0, 1, 1], [], []>} : vector<256x256xbf16>, vector<256x16xbf16>, vector<256x16xf32> -> vector<256x16xf32>
    %19 = vector.broadcast %0 : vector<256x1xf32> to vector<256x16xf32>
    %20 = arith.mulf %18, %19 : vector<256x16xf32>
    %c0_15 = arith.constant 0 : index
    %c0_16 = arith.constant 0 : index
    %21 = vector.load %arg6[%c0_15, %c0_16] : memref<1x16xf32, #tpu.memory_space<vmem>>, vector<1x16xf32>
    %22 = vector.broadcast %21 : vector<1x16xf32> to vector<256x16xf32>
    %23 = arith.addf %20, %22 : vector<256x16xf32>
    %cst_17 = arith.constant 0.000000e+00 : f32
    %24 = vector.broadcast %cst_17 : f32 to vector<256x16xf32>
    %25 = arith.maximumf %23, %24 : vector<256x16xf32>
    %c0_18 = arith.constant 0 : index
    %c0_19 = arith.constant 0 : index
    %26 = vector.load %arg7[%c0_18, %c0_19] : memref<16x128xf32, #tpu.memory_space<vmem>>, vector<16x128xf32>
    %cst_20 = arith.constant dense<0.000000e+00> : vector<256x128xf32>
    %27 = tpu.matmul %25, %26, %cst_20 {dimension_numbers = #tpu.dot_dimension_numbers<[1], [0], [0], [1], [0, 0, 1, 1], [], []>} : vector<256x16xf32>, vector<16x128xf32>, vector<256x128xf32> -> vector<256x128xf32>
    %c0_21 = arith.constant 0 : index
    %c0_22 = arith.constant 0 : index
    %28 = vector.load %arg8[%c0_21, %c0_22] : memref<1x128xf32, #tpu.memory_space<vmem>>, vector<1x128xf32>
    %29 = vector.broadcast %28 : vector<1x128xf32> to vector<256x128xf32>
    %30 = arith.addf %27, %29 : vector<256x128xf32>
    %cst_23 = arith.constant dense<0xFF800000> : vector<256xf32>
    %31 = vector.multi_reduction <maximumf>, %30, %cst_23 [1] : vector<256x128xf32> to vector<256xf32>
    %32 = vector.shape_cast %31 : vector<256xf32> to vector<256x1xf32>
    %33 = vector.broadcast %32 : vector<256x1xf32> to vector<256x128xf32>
    %34 = arith.subf %30, %33 : vector<256x128xf32>
    %35 = math.exp %34 : vector<256x128xf32>
    %cst_24 = arith.constant dense<0.000000e+00> : vector<256xf32>
    %36 = vector.multi_reduction <add>, %35, %cst_24 [1] : vector<256x128xf32> to vector<256xf32>
    %37 = vector.shape_cast %36 : vector<256xf32> to vector<256x1xf32>
    %38 = math.log %37 : vector<256x1xf32>
    %39 = arith.addf %32, %38 : vector<256x1xf32>
    %40 = vector.broadcast %39 : vector<256x1xf32> to vector<256x128xf32>
    %41 = arith.subf %30, %40 : vector<256x128xf32>
    %c0_25 = arith.constant 0 : index
    %c0_26 = arith.constant 0 : index
    %42 = vector.load %arg9[%c0_25, %c0_26] : memref<256x128xf32, #tpu.memory_space<vmem>>, vector<256x128xf32>
    tpu.vector_store %arg9[%c0_25, %c0_26], %41 {strides = array<i32>} : memref<256x128xf32, #tpu.memory_space<vmem>>, vector<256x128xf32>,
    return
  }
}

</mosaic_0001>

<llo_original>
// kernel: gnn_forward.1
$region0: #{gnn_forward.1}
  #allocation0 [shape = 'u32[]', space=smem, size = 0x4, offset = 0x4, fixed_abs, tag = 'smem constant byte address 0x4 - core index']
  #allocation1 [shape = 'u32[144,128]{1,0:T(1,128)}', space=vmem, size = 0x12000, scoped, tag = 'internal scratch']
  %s0 = inlined_call_operand.vmem [shape: bf16[256,256], index: 0, kind: input, shape index: {}]
  %s1 = inlined_call_operand.vmem [shape: bf16[256,8], index: 1, kind: input, shape index: {}]
  %s2 = inlined_call_operand.vmem [shape: f32[256,1], index: 2, kind: input, shape index: {}]
  %s3 = inlined_call_operand.vmem [shape: f32[8,32], index: 3, kind: input, shape index: {}]
  %s4 = inlined_call_operand.vmem [shape: f32[1,32], index: 4, kind: input, shape index: {}]
  %s5 = inlined_call_operand.vmem [shape: f32[32,16], index: 5, kind: input, shape index: {}]
  %s6 = inlined_call_operand.vmem [shape: f32[1,16], index: 6, kind: input, shape index: {}]
  %s7 = inlined_call_operand.vmem [shape: f32[16,128], index: 7, kind: input, shape index: {}]
  %s8 = inlined_call_operand.vmem [shape: f32[1,128], index: 8, kind: input, shape index: {}]
  %s9 = inlined_call_operand.vmem [shape: f32[256,128], index: 9, kind: output, shape index: {}]
  %s10 = sld [smem:[#allocation0]]
  $region46: #{gnn_forward.1} parent=0
    _
  %s12 = ssub.s32 1, %s10
  %s13 = scalar_select 0, %s12, %s10
  // Predicated region
  $region2: #{gnn_forward.1} parent=0 // pred_check
    _
  $region3: #{gnn_forward.1} parent=0 // pred_check_branch
    %15 = sbr.rel (0) target = $region5
  $region4: #{gnn_forward.1} parent=0 // pred_region
    _
  $region5: #{gnn_forward.1} parent=0 // pred_fallthru
    _
  // Predicated region
  $region6: #{gnn_forward.1} parent=0 // pred_check
    _
  $region7: #{gnn_forward.1} parent=0 // pred_check_branch
    %17 = sbr.rel (0) target = $region9
  $region8: #{gnn_forward.1} parent=0 // pred_region
    _
  $region9: #{gnn_forward.1} parent=0 // pred_fallthru
    _
  // Predicated region
  $region10: #{gnn_forward.1} parent=0 // pred_check
    _
  $region11: #{gnn_forward.1} parent=0 // pred_check_branch
    %19 = sbr.rel (0) target = $region13
  $region12: #{gnn_forward.1} parent=0 // pred_region
    _
  $region13: #{gnn_forward.1} parent=0 // pred_fallthru
    _
  // Predicated region
  $region14: #{gnn_forward.1} parent=0 // pred_check
    _
  $region15: #{gnn_forward.1} parent=0 // pred_check_branch
    %21 = sbr.rel (0) target = $region17
  $region16: #{gnn_forward.1} parent=0 // pred_region
    _
  $region17: #{gnn_forward.1} parent=0 // pred_fallthru
    _
  // Predicated region
  $region18: #{gnn_forward.1} parent=0 // pred_check
    _
  $region19: #{gnn_forward.1} parent=0 // pred_check_branch
    %23 = sbr.rel (0) target = $region21
  $region20: #{gnn_forward.1} parent=0 // pred_region
    _
  $region21: #{gnn_forward.1} parent=0 // pred_fallthru
    _
  // Predicated region
  $region22: #{gnn_forward.1} parent=0 // pred_check
    _
  $region23: #{gnn_forward.1} parent=0 // pred_check_branch
    %25 = sbr.rel (0) target = $region25
  $region24: #{gnn_forward.1} parent=0 // pred_region
    _
  $region25: #{gnn_forward.1} parent=0 // pred_fallthru
    _
  // Predicated region
  $region26: #{gnn_forward.1} parent=0 // pred_check
    _
  $region27: #{gnn_forward.1} parent=0 // pred_check_branch
    %27 = sbr.rel (0) target = $region29
  $region28: #{gnn_forward.1} parent=0 // pred_region
    _
  $region29: #{gnn_forward.1} parent=0 // pred_fallthru
    _
  // Predicated region
  $region30: #{gnn_forward.1} parent=0 // pred_check
    _
  $region31: #{gnn_forward.1} parent=0 // pred_check_branch
    %29 = sbr.rel (0) target = $region33
  $region32: #{gnn_forward.1} parent=0 // pred_region
    _
  $region33: #{gnn_forward.1} parent=0 // pred_fallthru
    _
  // Predicated region
  $region34: #{gnn_forward.1} parent=0 // pred_check
    _
  $region35: #{gnn_forward.1} parent=0 // pred_check_branch
    %31 = sbr.rel (0) target = $region37
  $region36: #{gnn_forward.1} parent=0 // pred_region
    _
  $region37: #{gnn_forward.1} parent=0 // pred_fallthru
    _
  %v33 = vld [vmem:[%s2] sm:$0xff]
  %v34 = vld [vmem:[%s2 + $0x8] sm:$0xff]
  %v35 = vld [vmem:[%s2 + $0x10] sm:$0xff]
  %v36 = vld [vmem:[%s2 + $0x18] sm:$0xff]
  %v37 = vld [vmem:[%s2 + $0x20] sm:$0xff]
  %v38 = vld [vmem:[%s2 + $0x28] sm:$0xff]
  %v39 = vld [vmem:[%s2 + $0x30] sm:$0xff]
  %v40 = vld [vmem:[%s2 + $0x38] sm:$0xff]
  %v41 = vld [vmem:[%s2 + $0x40] sm:$0xff]
  %v42 = vld [vmem:[%s2 + $0x48] sm:$0xff]
  %v43 = vld [vmem:[%s2 + $0x50] sm:$0xff]
  %v44 = vld [vmem:[%s2 + $0x58] sm:$0xff]
  %v45 = vld [vmem:[%s2 + $0x60] sm:$0xff]
  %v46 = vld [vmem:[%s2 + $0x68] sm:$0xff]
  %v47 = vld [vmem:[%s2 + $0x70] sm:$0xff]
  %v48 = vld [vmem:[%s2 + $0x78] sm:$0xff]
  %v49 = vld [vmem:[%s2 + $0x80] sm:$0xff]
  %v50 = vld [vmem:[%s2 + $0x88] sm:$0xff]
  %v51 = vld [vmem:[%s2 + $0x90] sm:$0xff]
  %v52 = vld [vmem:[%s2 + $0x98] sm:$0xff]
  %v53 = vld [vmem:[%s2 + $0xa0] sm:$0xff]
  %v54 = vld [vmem:[%s2 + $0xa8] sm:$0xff]
  %v55 = vld [vmem:[%s2 + $0xb0] sm:$0xff]
  %v56 = vld [vmem:[%s2 + $0xb8] sm:$0xff]
  %v57 = vld [vmem:[%s2 + $0xc0] sm:$0xff]
  %v58 = vld [vmem:[%s2 + $0xc8] sm:$0xff]
  %v59 = vld [vmem:[%s2 + $0xd0] sm:$0xff]
  %v60 = vld [vmem:[%s2 + $0xd8] sm:$0xff]
  %v61 = vld [vmem:[%s2 + $0xe0] sm:$0xff]
  %v62 = vld [vmem:[%s2 + $0xe8] sm:$0xff]
  %v63 = vld [vmem:[%s2 + $0xf0] sm:$0xff]
  %v64 = vld [vmem:[%s2 + $0xf8] sm:$0xff]
  %v65 = vld [vmem:[%s0] sm:$0xff]
  %v66 = vld [vmem:[%s0 + $0x8] sm:$0xff]
  %v67 = vld [vmem:[%s0 + $0x10] sm:$0xff]
  %v68 = vld [vmem:[%s0 + $0x18] sm:$0xff]
  %v69 = vld [vmem:[%s0 + $0x20] sm:$0xff]
  %v70 = vld [vmem:[%s0 + $0x28] sm:$0xff]
  %v71 = vld [vmem:[%s0 + $0x30] sm:$0xff]
  %v72 = vld [vmem:[%s0 + $0x38] sm:$0xff]
  %v73 = vld [vmem:[%s0 + $0x40] sm:$0xff]
  %v74 = vld [vmem:[%s0 + $0x48] sm:$0xff]
  %v75 = vld [vmem:[%s0 + $0x50] sm:$0xff]
  %v76 = vld [vmem:[%s0 + $0x58] sm:$0xff]
  %v77 = vld [vmem:[%s0 + $0x60] sm:$0xff]
  %v78 = vld [vmem:[%s0 + $0x68] sm:$0xff]
  %v79 = vld [vmem:[%s0 + $0x70] sm:$0xff]
  %v80 = vld [vmem:[%s0 + $0x78] sm:$0xff]
  %v81 = vld [vmem:[%s0 + $0x80] sm:$0xff]
  %v82 = vld [vmem:[%s0 + $0x88] sm:$0xff]
  %v83 = vld [vmem:[%s0 + $0x90] sm:$0xff]
  %v84 = vld [vmem:[%s0 + $0x98] sm:$0xff]
  %v85 = vld [vmem:[%s0 + $0xa0] sm:$0xff]
  %v86 = vld [vmem:[%s0 + $0xa8] sm:$0xff]
  %v87 = vld [vmem:[%s0 + $0xb0] sm:$0xff]
  %v88 = vld [vmem:[%s0 + $0xb8] sm:$0xff]
  %v89 = vld [vmem:[%s0 + $0xc0] sm:$0xff]
  %v90 = vld [vmem:[%s0 + $0xc8] sm:$0xff]
  %v91 = vld [vmem:[%s0 + $0xd0] sm:$0xff]
  %v92 = vld [vmem:[%s0 + $0xd8] sm:$0xff]
  %v93 = vld [vmem:[%s0 + $0xe0] sm:$0xff]
  %v94 = vld [vmem:[%s0 + $0xe8] sm:$0xff]
  %v95 = vld [vmem:[%s0 + $0xf0] sm:$0xff]
  %v96 = vld [vmem:[%s0 + $0xf8] sm:$0xff]
  %v97 = vld [vmem:[%s1] sm:$0xf]
  %v98 = vld [vmem:[%s1 + $0x4] sm:$0xf]
  %v99 = vld [vmem:[%s1 + $0x8] sm:$0xf]
  %v100 = vld [vmem:[%s1 + $0xc] sm:$0xf]
  %v101 = vld [vmem:[%s1 + $0x10] sm:$0xf]
  %v102 = vld [vmem:[%s1 + $0x14] sm:$0xf]
  %v103 = vld [vmem:[%s1 + $0x18] sm:$0xf]
  %v104 = vld [vmem:[%s1 + $0x1c] sm:$0xf]
  %v105 = vld [vmem:[%s1 + $0x20] sm:$0xf]
  %v106 = vld [vmem:[%s1 + $0x24] sm:$0xf]
  %v107 = vld [vmem:[%s1 + $0x28] sm:$0xf]
  %v108 = vld [vmem:[%s1 + $0x2c] sm:$0xf]
  %v109 = vld [vmem:[%s1 + $0x30] sm:$0xf]
  %v110 = vld [vmem:[%s1 + $0x34] sm:$0xf]
  %v111 = vld [vmem:[%s1 + $0x38] sm:$0xf]
  %v112 = vld [vmem:[%s1 + $0x3c] sm:$0xf]
  %v113 = vld [vmem:[%s1 + $0x40] sm:$0xf]
  %v114 = vld [vmem:[%s1 + $0x44] sm:$0xf]
  %v115 = vld [vmem:[%s1 + $0x48] sm:$0xf]
  %v116 = vld [vmem:[%s1 + $0x4c] sm:$0xf]
  %v117 = vld [vmem:[%s1 + $0x50] sm:$0xf]
  %v118 = vld [vmem:[%s1 + $0x54] sm:$0xf]
  %v119 = vld [vmem:[%s1 + $0x58] sm:$0xf]
  %v120 = vld [vmem:[%s1 + $0x5c] sm:$0xf]
  %v121 = vld [vmem:[%s1 + $0x60] sm:$0xf]
  %v122 = vld [vmem:[%s1 + $0x64] sm:$0xf]
  %v123 = vld [vmem:[%s1 + $0x68] sm:$0xf]
  %v124 = vld [vmem:[%s1 + $0x6c] sm:$0xf]
  %v125 = vld [vmem:[%s1 + $0x70] sm:$0xf]
  %v126 = vld [vmem:[%s1 + $0x74] sm:$0xf]
  %v127 = vld [vmem:[%s1 + $0x78] sm:$0xf]
  %v128 = vld [vmem:[%s1 + $0x7c] sm:$0xf]
  %v161 = vunpack.c.l.b16 %v65
  %v162 = vunpack.c.h.b16 %v65
  %v163 = vunpack.c.l.b16 %v66
  %v164 = vunpack.c.h.b16 %v66
  %v165 = vunpack.c.l.b16 %v67
  %v166 = vunpack.c.h.b16 %v67
  %v167 = vunpack.c.l.b16 %v68
  %v168 = vunpack.c.h.b16 %v68
  %v169 = vunpack.c.l.b16 %v69
  %v170 = vunpack.c.h.b16 %v69
  %v171 = vunpack.c.l.b16 %v70
  %v172 = vunpack.c.h.b16 %v70
  %v173 = vunpack.c.l.b16 %v71
  %v174 = vunpack.c.h.b16 %v71
  %v175 = vunpack.c.l.b16 %v72
  %v176 = vunpack.c.h.b16 %v72
  %v177 = vunpack.c.l.b16 %v73
  %v178 = vunpack.c.h.b16 %v73
  %v179 = vunpack.c.l.b16 %v74
  %v180 = vunpack.c.h.b16 %v74
  %v181 = vunpack.c.l.b16 %v75
  %v182 = vunpack.c.h.b16 %v75
  %v183 = vunpack.c.l.b16 %v76
  %v184 = vunpack.c.h.b16 %v76
  %v185 = vunpack.c.l.b16 %v77
  %v186 = vunpack.c.h.b16 %v77
  %v187 = vunpack.c.l.b16 %v78
  %v188 = vunpack.c.h.b16 %v78
  %v189 = vunpack.c.l.b16 %v79
  %v190 = vunpack.c.h.b16 %v79
  %v191 = vunpack.c.l.b16 %v80
  %v192 = vunpack.c.h.b16 %v80
  %v193 = vunpack.c.l.b16 %v81
  %v194 = vunpack.c.h.b16 %v81
  %v195 = vunpack.c.l.b16 %v82
  %v196 = vunpack.c.h.b16 %v82
  %v197 = vunpack.c.l.b16 %v83
  %v198 = vunpack.c.h.b16 %v83
  %v199 = vunpack.c.l.b16 %v84
  %v200 = vunpack.c.h.b16 %v84
  %v201 = vunpack.c.l.b16 %v85
  %v202 = vunpack.c.h.b16 %v85
  %v203 = vunpack.c.l.b16 %v86
  %v204 = vunpack.c.h.b16 %v86
  %v205 = vunpack.c.l.b16 %v87
  %v206 = vunpack.c.h.b16 %v87
  %v207 = vunpack.c.l.b16 %v88
  %v208 = vunpack.c.h.b16 %v88
  %v209 = vunpack.c.l.b16 %v89
  %v210 = vunpack.c.h.b16 %v89
  %v211 = vunpack.c.l.b16 %v90
  %v212 = vunpack.c.h.b16 %v90
  %v213 = vunpack.c.l.b16 %v91
  %v214 = vunpack.c.h.b16 %v91
  %v215 = vunpack.c.l.b16 %v92
  %v216 = vunpack.c.h.b16 %v92
  %v217 = vunpack.c.l.b16 %v93
  %v218 = vunpack.c.h.b16 %v93
  %v219 = vunpack.c.l.b16 %v94
  %v220 = vunpack.c.h.b16 %v94
  %v221 = vunpack.c.l.b16 %v95
  %v222 = vunpack.c.h.b16 %v95
  %v223 = vunpack.c.l.b16 %v96
  %v224 = vunpack.c.h.b16 %v96
  %v225 = vpack.c.b16 %v163, %v161
  %v226 = vpack.c.b16 %v164, %v162
  %v227 = vpack.c.b16 %v167, %v165
  %v228 = vpack.c.b16 %v168, %v166
  %v229 = vpack.c.b16 %v171, %v169
  %v230 = vpack.c.b16 %v172, %v170
  %v231 = vpack.c.b16 %v175, %v173
  %v232 = vpack.c.b16 %v176, %v174
  %v233 = vpack.c.b16 %v179, %v177
  %v234 = vpack.c.b16 %v180, %v178
  %v235 = vpack.c.b16 %v183, %v181
  %v236 = vpack.c.b16 %v184, %v182
  %v237 = vpack.c.b16 %v187, %v185
  %v238 = vpack.c.b16 %v188, %v186
  %v239 = vpack.c.b16 %v191, %v189
  %v240 = vpack.c.b16 %v192, %v190
  %v241 = vpack.c.b16 %v195, %v193
  %v242 = vpack.c.b16 %v196, %v194
  %v243 = vpack.c.b16 %v199, %v197
  %v244 = vpack.c.b16 %v200, %v198
  %v245 = vpack.c.b16 %v203, %v201
  %v246 = vpack.c.b16 %v204, %v202
  %v247 = vpack.c.b16 %v207, %v205
  %v248 = vpack.c.b16 %v208, %v206
  %v249 = vpack.c.b16 %v211, %v209
  %v250 = vpack.c.b16 %v212, %v210
  %v251 = vpack.c.b16 %v215, %v213
  %v252 = vpack.c.b16 %v216, %v214
  %v253 = vpack.c.b16 %v219, %v217
  %v254 = vpack.c.b16 %v220, %v218
  %v255 = vpack.c.b16 %v223, %v221
  %v256 = vpack.c.b16 %v224, %v222
  %v321 = vunpack.c.l.b16 %v97
  %v322 = vunpack.c.l.b16 %v98
  %v323 = vunpack.c.l.b16 %v99
  %v324 = vunpack.c.l.b16 %v100
  %v325 = vunpack.c.l.b16 %v101
  %v326 = vunpack.c.l.b16 %v102
  %v327 = vunpack.c.l.b16 %v103
  %v328 = vunpack.c.l.b16 %v104
  %v329 = vunpack.c.l.b16 %v105
  %v330 = vunpack.c.l.b16 %v106
  %v331 = vunpack.c.l.b16 %v107
  %v332 = vunpack.c.l.b16 %v108
  %v333 = vunpack.c.l.b16 %v109
  %v334 = vunpack.c.l.b16 %v110
  %v335 = vunpack.c.l.b16 %v111
  %v336 = vunpack.c.l.b16 %v112
  %v337 = vunpack.c.l.b16 %v113
  %v338 = vunpack.c.l.b16 %v114
  %v339 = vunpack.c.l.b16 %v115
  %v340 = vunpack.c.l.b16 %v116
  %v341 = vunpack.c.l.b16 %v117
  %v342 = vunpack.c.l.b16 %v118
  %v343 = vunpack.c.l.b16 %v119
  %v344 = vunpack.c.l.b16 %v120
  %v345 = vunpack.c.l.b16 %v121
  %v346 = vunpack.c.l.b16 %v122
  %v347 = vunpack.c.l.b16 %v123
  %v348 = vunpack.c.l.b16 %v124
  %v349 = vunpack.c.l.b16 %v125
  %v350 = vunpack.c.l.b16 %v126
  %v351 = vunpack.c.l.b16 %v127
  %v352 = vunpack.c.l.b16 %v128
  %v353 = vpack.c.b16 %v322, %v321
  %v354 = vpack.c.b16 %v324, %v323
  %v355 = vpack.c.b16 %v326, %v325
  %v356 = vpack.c.b16 %v328, %v327
  %v357 = vpack.c.b16 %v330, %v329
  %v358 = vpack.c.b16 %v332, %v331
  %v359 = vpack.c.b16 %v334, %v333
  %v360 = vpack.c.b16 %v336, %v335
  %v361 = vpack.c.b16 %v338, %v337
  %v362 = vpack.c.b16 %v340, %v339
  %v363 = vpack.c.b16 %v342, %v341
  %v364 = vpack.c.b16 %v344, %v343
  %v365 = vpack.c.b16 %v346, %v345
  %v366 = vpack.c.b16 %v348, %v347
  %v367 = vpack.c.b16 %v350, %v349
  %v368 = vpack.c.b16 %v352, %v351
  %385 = vmatprep.subr.bf16.mxu0 0
  %386 = vmatpush1.bf16.msra.mxu0 %v360
  %387 = vmatprep.subr.bf16.mxu0 0
  %388 = vmatpush1.bf16.msra.mxu0 %v359
  %389 = vmatprep.subr.bf16.mxu0 0
  %390 = vmatpush1.bf16.msra.mxu0 %v358
  %391 = vmatprep.subr.bf16.mxu0 0
  %392 = vmatpush1.bf16.msra.mxu0 %v357
  %393 = vmatprep.subr.bf16.mxu0 0
  %394 = vmatpush1.bf16.msra.mxu0 %v356
  %395 = vmatprep.subr.bf16.mxu0 0
  %396 = vmatpush1.bf16.msra.mxu0 %v355
  %397 = vmatprep.subr.bf16.mxu0 0
  %398 = vmatpush1.bf16.msra.mxu0 %v354
  %399 = vmatprep.subr.bf16.mxu0 0
  %400 = vmatpush1.bf16.msra.mxu0 %v353
  %401 = vmatprep.subr.bf16.mxu0 0
  %402 = vmatpush2.bf16.msra.mxu0 %v368
  %403 = vmatprep.subr.bf16.mxu0 0
  %404 = vmatpush2.bf16.msra.mxu0 %v367
  %405 = vmatprep.subr.bf16.mxu0 0
  %406 = vmatpush2.bf16.msra.mxu0 %v366
  %407 = vmatprep.subr.bf16.mxu0 0
  %408 = vmatpush2.bf16.msra.mxu0 %v365
  %409 = vmatprep.subr.bf16.mxu0 0
  %410 = vmatpush2.bf16.msra.mxu0 %v364
  %411 = vmatprep.subr.bf16.mxu0 0
  %412 = vmatpush2.bf16.msra.mxu0 %v363
  %413 = vmatprep.subr.bf16.mxu0 0
  %414 = vmatpush2.bf16.msra.mxu0 %v362
  %415 = vmatprep.subr.bf16.mxu0 0
  %416 = vmatpush2.bf16.msra.mxu0 %v361
  %417 = vmatprep.mubr.bf16.mxu0 %v226
  %418 = vmatmul.mubr.bf16.gmra.mxu0 %v225
  %v419 = vpop.f32.mrf.mxu0
  %v420 = vadd.f32 0.0, %v419
  %v421 = vpop.f32.mrf.mxu0
  %v422 = vpop.f32.mrf.mxu0
  %v423 = vadd.f32 0.0, %v422
  %v424 = vpop.f32.mrf.mxu0
  %425 = vmatprep.mubr.bf16.mxu0 %v228
  %426 = vmatmul.mubr.bf16.gmra.mxu0 %v227
  %v427 = vpop.f32.mrf.mxu0
  %v428 = vadd.f32 0.0, %v427
  %v429 = vpop.f32.mrf.mxu0
  %v430 = vpop.f32.mrf.mxu0
  %v431 = vadd.f32 0.0, %v430
  %v432 = vpop.f32.mrf.mxu0
  %433 = vmatprep.mubr.bf16.mxu0 %v230
  %434 = vmatmul.mubr.bf16.gmra.mxu0 %v229
  %v435 = vpop.f32.mrf.mxu0
  %v436 = vadd.f32 0.0, %v435
  %v437 = vpop.f32.mrf.mxu0
  %v438 = vpop.f32.mrf.mxu0
  %v439 = vadd.f32 0.0, %v438
  %v440 = vpop.f32.mrf.mxu0
  %441 = vmatprep.mubr.bf16.mxu0 %v232
  %442 = vmatmul.mubr.bf16.gmra.mxu0 %v231
  %v443 = vpop.f32.mrf.mxu0
  %v444 = vadd.f32 0.0, %v443
  %v445 = vpop.f32.mrf.mxu0
  %v446 = vpop.f32.mrf.mxu0
  %v447 = vadd.f32 0.0, %v446
  %v448 = vpop.f32.mrf.mxu0
  %449 = vmatprep.mubr.bf16.mxu0 %v234
  %450 = vmatmul.mubr.bf16.gmra.mxu0 %v233
  %v451 = vpop.f32.mrf.mxu0
  %v452 = vadd.f32 0.0, %v451
  %v453 = vpop.f32.mrf.mxu0
  %v454 = vpop.f32.mrf.mxu0
  %v455 = vadd.f32 0.0, %v454
  %v456 = vpop.f32.mrf.mxu0
  %457 = vmatprep.mubr.bf16.mxu0 %v236
  %458 = vmatmul.mubr.bf16.gmra.mxu0 %v235
  %v459 = vpop.f32.mrf.mxu0
  %v460 = vadd.f32 0.0, %v459
  %v461 = vpop.f32.mrf.mxu0
  %v462 = vpop.f32.mrf.mxu0
  %v463 = vadd.f32 0.0, %v462
  %v464 = vpop.f32.mrf.mxu0
  %465 = vmatprep.mubr.bf16.mxu0 %v238
  %466 = vmatmul.mubr.bf16.gmra.mxu0 %v237
  %v467 = vpop.f32.mrf.mxu0
  %v468 = vadd.f32 0.0, %v467
  %v469 = vpop.f32.mrf.mxu0
  %v470 = vpop.f32.mrf.mxu0
  %v471 = vadd.f32 0.0, %v470
  %v472 = vpop.f32.mrf.mxu0
  %473 = vmatprep.mubr.bf16.mxu0 %v240
  %474 = vmatmul.mubr.bf16.gmra.mxu0 %v239
  %v475 = vpop.f32.mrf.mxu0
  %v476 = vadd.f32 0.0, %v475
  %v477 = vpop.f32.mrf.mxu0
  %v478 = vpop.f32.mrf.mxu0
  %v479 = vadd.f32 0.0, %v478
  %v480 = vpop.f32.mrf.mxu0
  %481 = vmatprep.mubr.bf16.mxu0 %v242
  %482 = vmatmul.mubr.bf16.gmra.mxu0 %v241
  %v483 = vpop.f32.mrf.mxu0
  %v484 = vadd.f32 0.0, %v483
  %v485 = vpop.f32.mrf.mxu0
  %v486 = vpop.f32.mrf.mxu0
  %v487 = vadd.f32 0.0, %v486
  %v488 = vpop.f32.mrf.mxu0
  %489 = vmatprep.mubr.bf16.mxu0 %v244
  %490 = vmatmul.mubr.bf16.gmra.mxu0 %v243
  %v491 = vpop.f32.mrf.mxu0
  %v492 = vadd.f32 0.0, %v491
  %v493 = vpop.f32.mrf.mxu0
  %v494 = vpop.f32.mrf.mxu0
  %v495 = vadd.f32 0.0, %v494
  %v496 = vpop.f32.mrf.mxu0
  %497 = vmatprep.mubr.bf16.mxu0 %v246
  %498 = vmatmul.mubr.bf16.gmra.mxu0 %v245
  %v499 = vpop.f32.mrf.mxu0
  %v500 = vadd.f32 0.0, %v499
  %v501 = vpop.f32.mrf.mxu0
  %v502 = vpop.f32.mrf.mxu0
  %v503 = vadd.f32 0.0, %v502
  %v504 = vpop.f32.mrf.mxu0
  %505 = vmatprep.mubr.bf16.mxu0 %v248
  %506 = vmatmul.mubr.bf16.gmra.mxu0 %v247
  %v507 = vpop.f32.mrf.mxu0
  %v508 = vadd.f32 0.0, %v507
  %v509 = vpop.f32.mrf.mxu0
  %v510 = vpop.f32.mrf.mxu0
  %v511 = vadd.f32 0.0, %v510
  %v512 = vpop.f32.mrf.mxu0
  %513 = vmatprep.mubr.bf16.mxu0 %v250
  %514 = vmatmul.mubr.bf16.gmra.mxu0 %v249
  %v515 = vpop.f32.mrf.mxu0
  %v516 = vadd.f32 0.0, %v515
  %v517 = vpop.f32.mrf.mxu0
  %v518 = vpop.f32.mrf.mxu0
  %v519 = vadd.f32 0.0, %v518
  %v520 = vpop.f32.mrf.mxu0
  %521 = vmatprep.mubr.bf16.mxu0 %v252
  %522 = vmatmul.mubr.bf16.gmra.mxu0 %v251
  %v523 = vpop.f32.mrf.mxu0
  %v524 = vadd.f32 0.0, %v523
  %v525 = vpop.f32.mrf.mxu0
  %v526 = vpop.f32.mrf.mxu0
  %v527 = vadd.f32 0.0, %v526
  %v528 = vpop.f32.mrf.mxu0
  %529 = vmatprep.mubr.bf16.mxu0 %v254
  %530 = vmatmul.mubr.bf16.gmra.mxu0 %v253
  %v531 = vpop.f32.mrf.mxu0
  %v532 = vadd.f32 0.0, %v531
  %v533 = vpop.f32.mrf.mxu0
  %v534 = vpop.f32.mrf.mxu0
  %v535 = vadd.f32 0.0, %v534
  %v536 = vpop.f32.mrf.mxu0
  %537 = vmatprep.mubr.bf16.mxu0 %v256
  %538 = vmatmul.mubr.bf16.gmra.mxu0 %v255
  %v539 = vpop.f32.mrf.mxu0
  %v540 = vadd.f32 0.0, %v539
  %v541 = vpop.f32.mrf.mxu0
  %v542 = vpop.f32.mrf.mxu0
  %v543 = vadd.f32 0.0, %v542
  %v544 = vpop.f32.mrf.mxu0
  %545 = vdwg.mxu0
  %547 = vset.pattern.permute.xlu0 0
  %548 = vperm.xlu0 %547, %v33
  %v549 = vpop.permute.xlu0 %548
  %552 = vset.pattern.permute.xlu0 0
  %553 = vperm.xlu0 %552, %v34
  %v554 = vpop.permute.xlu0 %553
  %557 = vset.pattern.permute.xlu0 0
  %558 = vperm.xlu0 %557, %v35
  %v559 = vpop.permute.xlu0 %558
  %562 = vset.pattern.permute.xlu0 0
  %563 = vperm.xlu0 %562, %v36
  %v564 = vpop.permute.xlu0 %563
  %567 = vset.pattern.permute.xlu0 0
  %568 = vperm.xlu0 %567, %v37
  %v569 = vpop.permute.xlu0 %568
  %572 = vset.pattern.permute.xlu0 0
  %573 = vperm.xlu0 %572, %v38
  %v574 = vpop.permute.xlu0 %573
  %577 = vset.pattern.permute.xlu0 0
  %578 = vperm.xlu0 %577, %v39
  %v579 = vpop.permute.xlu0 %578
  %582 = vset.pattern.permute.xlu0 0
  %583 = vperm.xlu0 %582, %v40
  %v584 = vpop.permute.xlu0 %583
  %587 = vset.pattern.permute.xlu0 0
  %588 = vperm.xlu0 %587, %v41
  %v589 = vpop.permute.xlu0 %588
  %592 = vset.pattern.permute.xlu0 0
  %593 = vperm.xlu0 %592, %v42
  %v594 = vpop.permute.xlu0 %593
  %597 = vset.pattern.permute.xlu0 0
  %598 = vperm.xlu0 %597, %v43
  %v599 = vpop.permute.xlu0 %598
  %602 = vset.pattern.permute.xlu0 0
  %603 = vperm.xlu0 %602, %v44
  %v604 = vpop.permute.xlu0 %603
  %607 = vset.pattern.permute.xlu0 0
  %608 = vperm.xlu0 %607, %v45
  %v609 = vpop.permute.xlu0 %608
  %612 = vset.pattern.permute.xlu0 0
  %613 = vperm.xlu0 %612, %v46
  %v614 = vpop.permute.xlu0 %613
  %617 = vset.pattern.permute.xlu0 0
  %618 = vperm.xlu0 %617, %v47
  %v619 = vpop.permute.xlu0 %618
  %622 = vset.pattern.permute.xlu0 0
  %623 = vperm.xlu0 %622, %v48
  %v624 = vpop.permute.xlu0 %623
  %627 = vset.pattern.permute.xlu0 0
  %628 = vperm.xlu0 %627, %v49
  %v629 = vpop.permute.xlu0 %628
  %632 = vset.pattern.permute.xlu0 0
  %633 = vperm.xlu0 %632, %v50
  %v634 = vpop.permute.xlu0 %633
  %637 = vset.pattern.permute.xlu0 0
  %638 = vperm.xlu0 %637, %v51
  %v639 = vpop.permute.xlu0 %638
  %642 = vset.pattern.permute.xlu0 0
  %643 = vperm.xlu0 %642, %v52
  %v644 = vpop.permute.xlu0 %643
  %647 = vset.pattern.permute.xlu0 0
  %648 = vperm.xlu0 %647, %v53
  %v649 = vpop.permute.xlu0 %648
  %652 = vset.pattern.permute.xlu0 0
  %653 = vperm.xlu0 %652, %v54
  %v654 = vpop.permute.xlu0 %653
  %657 = vset.pattern.permute.xlu0 0
  %658 = vperm.xlu0 %657, %v55
  %v659 = vpop.permute.xlu0 %658
  %662 = vset.pattern.permute.xlu0 0
  %663 = vperm.xlu0 %662, %v56
  %v664 = vpop.permute.xlu0 %663
  %667 = vset.pattern.permute.xlu0 0
  %668 = vperm.xlu0 %667, %v57
  %v669 = vpop.permute.xlu0 %668
  %672 = vset.pattern.permute.xlu0 0
  %673 = vperm.xlu0 %672, %v58
  %v674 = vpop.permute.xlu0 %673
  %677 = vset.pattern.permute.xlu0 0
  %678 = vperm.xlu0 %677, %v59
  %v679 = vpop.permute.xlu0 %678
  %682 = vset.pattern.permute.xlu0 0
  %683 = vperm.xlu0 %682, %v60
  %v684 = vpop.permute.xlu0 %683
  %687 = vset.pattern.permute.xlu0 0
  %688 = vperm.xlu0 %687, %v61
  %v689 = vpop.permute.xlu0 %688
  %692 = vset.pattern.permute.xlu0 0
  %693 = vperm.xlu0 %692, %v62
  %v694 = vpop.permute.xlu0 %693
  %697 = vset.pattern.permute.xlu0 0
  %698 = vperm.xlu0 %697, %v63
  %v699 = vpop.permute.xlu0 %698
  %702 = vset.pattern.permute.xlu0 0
  %703 = vperm.xlu0 %702, %v64
  %v704 = vpop.permute.xlu0 %703
  %v706 = vmul.f32 %v420, %v549
  %v707 = vmul.f32 %v423, %v554
  %v708 = vmul.f32 %v428, %v559
  %v709 = vmul.f32 %v431, %v564
  %v710 = vmul.f32 %v436, %v569
  %v711 = vmul.f32 %v439, %v574
  %v712 = vmul.f32 %v444, %v579
  %v713 = vmul.f32 %v447, %v584
  %v714 = vmul.f32 %v452, %v589
  %v715 = vmul.f32 %v455, %v594
  %v716 = vmul.f32 %v460, %v599
  %v717 = vmul.f32 %v463, %v604
  %v718 = vmul.f32 %v468, %v609
  %v719 = vmul.f32 %v471, %v614
  %v720 = vmul.f32 %v476, %v619
  %v721 = vmul.f32 %v479, %v624
  %v722 = vmul.f32 %v484, %v629
  %v723 = vmul.f32 %v487, %v634
  %v724 = vmul.f32 %v492, %v639
  %v725 = vmul.f32 %v495, %v644
  %v726 = vmul.f32 %v500, %v649
  %v727 = vmul.f32 %v503, %v654
  %v728 = vmul.f32 %v508, %v659
  %v729 = vmul.f32 %v511, %v664
  %v730 = vmul.f32 %v516, %v669
  %v731 = vmul.f32 %v519, %v674
  %v732 = vmul.f32 %v524, %v679
  %v733 = vmul.f32 %v527, %v684
  %v734 = vmul.f32 %v532, %v689
  %v735 = vmul.f32 %v535, %v694
  %v736 = vmul.f32 %v540, %v699
  %v737 = vmul.f32 %v543, %v704
  %v738 = vld [vmem:[%s3] sm:$0xff]
  %v739 = vld [vmem:[%s4] sm:$0x1]
  %v741 = vlaneseq
  %v742 = vshrl.u32 %v741, 7
  %v743 = vsub.s32 0, %v742
  %v744 = vrot.slane %v739, %v743
  %vm746 = vcmask 64512
  %v748 = vsel %vm746, %v706, 0
  %v751 = vsel %vm746, %v707, 0
  %v754 = vsel %vm746, %v708, 0
  %v757 = vsel %vm746, %v709, 0
  %v760 = vsel %vm746, %v710, 0
  %v763 = vsel %vm746, %v711, 0
  %v766 = vsel %vm746, %v712, 0
  %v769 = vsel %vm746, %v713, 0
  %v772 = vsel %vm746, %v714, 0
  %v775 = vsel %vm746, %v715, 0
  %v778 = vsel %vm746, %v716, 0
  %v781 = vsel %vm746, %v717, 0
  %v784 = vsel %vm746, %v718, 0
  %v787 = vsel %vm746, %v719, 0
  %v790 = vsel %vm746, %v720, 0
  %v793 = vsel %vm746, %v721, 0
  %v796 = vsel %vm746, %v722, 0
  %v799 = vsel %vm746, %v723, 0
  %v802 = vsel %vm746, %v724, 0
  %v805 = vsel %vm746, %v725, 0
  %v808 = vsel %vm746, %v726, 0
  %v811 = vsel %vm746, %v727, 0
  %v814 = vsel %vm746, %v728, 0
  %v817 = vsel %vm746, %v729, 0
  %v820 = vsel %vm746, %v730, 0
  %v823 = vsel %vm746, %v731, 0
  %v826 = vsel %vm746, %v732, 0
  %v829 = vsel %vm746, %v733, 0
  %v832 = vsel %vm746, %v734, 0
  %v835 = vsel %vm746, %v735, 0
  %v838 = vsel %vm746, %v736, 0
  %v841 = vsel %vm746, %v737, 0
  %843 = vmatprep.subr.mxu0 0.0
  %844 = vmatpush1.msra.mxu0 0.0
  %845 = vmatprep.subr.mxu0 0.0
  %846 = vmatpush1.msra.mxu0 0.0
  %847 = vmatprep.subr.mxu0 0.0
  %848 = vmatpush1.msra.mxu0 0.0
  %849 = vmatprep.subr.mxu0 0.0
  %850 = vmatpush1.msra.mxu0 0.0
  %851 = vmatprep.subr.mxu0 0.0
  %852 = vmatpush1.msra.mxu0 0.0
  %853 = vmatprep.subr.mxu0 0.0
  %854 = vmatpush1.msra.mxu0 0.0
  %855 = vmatprep.subr.mxu0 0.0
  %856 = vmatpush1.msra.mxu0 0.0
  %857 = vmatprep.subr.mxu0 0.0
  %858 = vmatpush1.msra.mxu0 0.0
  %859 = vmatprep.subr.mxu0 0.0
  %860 = vmatpush1.msra.mxu0 0.0
  %861 = vmatprep.subr.mxu0 0.0
  %862 = vmatpush1.msra.mxu0 0.0
  %863 = vmatprep.subr.mxu0 0.0
  %864 = vmatpush1.msra.mxu0 0.0
  %865 = vmatprep.subr.mxu0 0.0
  %866 = vmatpush1.msra.mxu0 0.0
  %867 = vmatprep.subr.mxu0 0.0
  %868 = vmatpush1.msra.mxu0 0.0
  %869 = vmatprep.subr.mxu0 0.0
  %870 = vmatpush1.msra.mxu0 0.0
  %871 = vmatprep.subr.mxu0 0.0
  %872 = vmatpush1.msra.mxu0 0.0
  %873 = vmatprep.subr.mxu0 0.0
  %874 = vmatpush1.msra.mxu0 %v738
  %875 = vmatprep.subr.mxu0 0.0
  %876 = vmatpush2.msra.mxu0 0.0
  %877 = vmatprep.subr.mxu0 0.0
  %878 = vmatpush2.msra.mxu0 0.0
  %879 = vmatprep.subr.mxu0 0.0
  %880 = vmatpush2.msra.mxu0 0.0
  %881 = vmatprep.subr.mxu0 0.0
  %882 = vmatpush2.msra.mxu0 0.0
  %883 = vmatprep.subr.mxu0 0.0
  %884 = vmatpush2.msra.mxu0 0.0
  %885 = vmatprep.subr.mxu0 0.0
  %886 = vmatpush2.msra.mxu0 0.0
  %887 = vmatprep.subr.mxu0 0.0
  %888 = vmatpush2.msra.mxu0 0.0
  %889 = vmatprep.subr.mxu0 0.0
  %890 = vmatpush2.msra.mxu0 0.0
  %891 = vmatprep.subr.mxu0 0.0
  %892 = vmatpush2.msra.mxu0 0.0
  %893 = vmatprep.subr.mxu0 0.0
  %894 = vmatpush2.msra.mxu0 0.0
  %895 = vmatprep.subr.mxu0 0.0
  %896 = vmatpush2.msra.mxu0 0.0
  %897 = vmatprep.subr.mxu0 0.0
  %898 = vmatpush2.msra.mxu0 0.0
  %899 = vmatprep.subr.mxu0 0.0
  %900 = vmatpush2.msra.mxu0 0.0
  %901 = vmatprep.subr.mxu0 0.0
  %902 = vmatpush2.msra.mxu0 0.0
  %903 = vmatprep.subr.mxu0 0.0
  %904 = vmatpush2.msra.mxu0 0.0
  %905 = vmatprep.subr.mxu0 0.0
  %906 = vmatpush2.msra.mxu0 0.0
  %907 = vmatprep.mubr.f32.mxu0 0.0
  %908 = vmatmul.mubr.f32.gmra.mxu0 %v748
  %v909 = vpop.f32.mrf.mxu0
  %v910 = vadd.f32 %v744, %v909
  %v911 = vpop.f32.mrf.mxu0
  %912 = vmatprep.mubr.f32.mxu0 0.0
  %913 = vmatmul.mubr.f32.gmra.mxu0 %v751
  %v914 = vpop.f32.mrf.mxu0
  %v915 = vadd.f32 %v744, %v914
  %v916 = vpop.f32.mrf.mxu0
  %917 = vmatprep.mubr.f32.mxu0 0.0
  %918 = vmatmul.mubr.f32.gmra.mxu0 %v754
  %v919 = vpop.f32.mrf.mxu0
  %v920 = vadd.f32 %v744, %v919
  %v921 = vpop.f32.mrf.mxu0
  %922 = vmatprep.mubr.f32.mxu0 0.0
  %923 = vmatmul.mubr.f32.gmra.mxu0 %v757
  %v924 = vpop.f32.mrf.mxu0
  %v925 = vadd.f32 %v744, %v924
  %v926 = vpop.f32.mrf.mxu0
  %927 = vmatprep.mubr.f32.mxu0 0.0
  %928 = vmatmul.mubr.f32.gmra.mxu0 %v760
  %v929 = vpop.f32.mrf.mxu0
  %v930 = vadd.f32 %v744, %v929
  %v931 = vpop.f32.mrf.mxu0
  %932 = vmatprep.mubr.f32.mxu0 0.0
  %933 = vmatmul.mubr.f32.gmra.mxu0 %v763
  %v934 = vpop.f32.mrf.mxu0
  %v935 = vadd.f32 %v744, %v934
  %v936 = vpop.f32.mrf.mxu0
  %937 = vmatprep.mubr.f32.mxu0 0.0
  %938 = vmatmul.mubr.f32.gmra.mxu0 %v766
  %v939 = vpop.f32.mrf.mxu0
  %v940 = vadd.f32 %v744, %v939
  %v941 = vpop.f32.mrf.mxu0
  %942 = vmatprep.mubr.f32.mxu0 0.0
  %943 = vmatmul.mubr.f32.gmra.mxu0 %v769
  %v944 = vpop.f32.mrf.mxu0
  %v945 = vadd.f32 %v744, %v944
  %v946 = vpop.f32.mrf.mxu0
  %947 = vmatprep.mubr.f32.mxu0 0.0
  %948 = vmatmul.mubr.f32.gmra.mxu0 %v772
  %v949 = vpop.f32.mrf.mxu0
  %v950 = vadd.f32 %v744, %v949
  %v951 = vpop.f32.mrf.mxu0
  %952 = vmatprep.mubr.f32.mxu0 0.0
  %953 = vmatmul.mubr.f32.gmra.mxu0 %v775
  %v954 = vpop.f32.mrf.mxu0
  %v955 = vadd.f32 %v744, %v954
  %v956 = vpop.f32.mrf.mxu0
  %957 = vmatprep.mubr.f32.mxu0 0.0
  %958 = vmatmul.mubr.f32.gmra.mxu0 %v778
  %v959 = vpop.f32.mrf.mxu0
  %v960 = vadd.f32 %v744, %v959
  %v961 = vpop.f32.mrf.mxu0
  %962 = vmatprep.mubr.f32.mxu0 0.0
  %963 = vmatmul.mubr.f32.gmra.mxu0 %v781
  %v964 = vpop.f32.mrf.mxu0
  %v965 = vadd.f32 %v744, %v964
  %v966 = vpop.f32.mrf.mxu0
  %967 = vmatprep.mubr.f32.mxu0 0.0
  %968 = vmatmul.mubr.f32.gmra.mxu0 %v784
  %v969 = vpop.f32.mrf.mxu0
  %v970 = vadd.f32 %v744, %v969
  %v971 = vpop.f32.mrf.mxu0
  %972 = vmatprep.mubr.f32.mxu0 0.0
  %973 = vmatmul.mubr.f32.gmra.mxu0 %v787
  %v974 = vpop.f32.mrf.mxu0
  %v975 = vadd.f32 %v744, %v974
  %v976 = vpop.f32.mrf.mxu0
  %977 = vmatprep.mubr.f32.mxu0 0.0
  %978 = vmatmul.mubr.f32.gmra.mxu0 %v790
  %v979 = vpop.f32.mrf.mxu0
  %v980 = vadd.f32 %v744, %v979
  %v981 = vpop.f32.mrf.mxu0
  %982 = vmatprep.mubr.f32.mxu0 0.0
  %983 = vmatmul.mubr.f32.gmra.mxu0 %v793
  %v984 = vpop.f32.mrf.mxu0
  %v985 = vadd.f32 %v744, %v984
  %v986 = vpop.f32.mrf.mxu0
  %987 = vmatprep.mubr.f32.mxu0 0.0
  %988 = vmatmul.mubr.f32.gmra.mxu0 %v796
  %v989 = vpop.f32.mrf.mxu0
  %v990 = vadd.f32 %v744, %v989
  %v991 = vpop.f32.mrf.mxu0
  %992 = vmatprep.mubr.f32.mxu0 0.0
  %993 = vmatmul.mubr.f32.gmra.mxu0 %v799
  %v994 = vpop.f32.mrf.mxu0
  %v995 = vadd.f32 %v744, %v994
  %v996 = vpop.f32.mrf.mxu0
  %997 = vmatprep.mubr.f32.mxu0 0.0
  %998 = vmatmul.mubr.f32.gmra.mxu0 %v802
  %v999 = vpop.f32.mrf.mxu0
  %v1000 = vadd.f32 %v744, %v999
  %v1001 = vpop.f32.mrf.mxu0
  %1002 = vmatprep.mubr.f32.mxu0 0.0
  %1003 = vmatmul.mubr.f32.gmra.mxu0 %v805
  %v1004 = vpop.f32.mrf.mxu0
  %v1005 = vadd.f32 %v744, %v1004
  %v1006 = vpop.f32.mrf.mxu0
  %1007 = vmatprep.mubr.f32.mxu0 0.0
  %1008 = vmatmul.mubr.f32.gmra.mxu0 %v808
  %v1009 = vpop.f32.mrf.mxu0
  %v1010 = vadd.f32 %v744, %v1009
  %v1011 = vpop.f32.mrf.mxu0
  %1012 = vmatprep.mubr.f32.mxu0 0.0
  %1013 = vmatmul.mubr.f32.gmra.mxu0 %v811
  %v1014 = vpop.f32.mrf.mxu0
  %v1015 = vadd.f32 %v744, %v1014
  %v1016 = vpop.f32.mrf.mxu0
  %1017 = vmatprep.mubr.f32.mxu0 0.0
  %1018 = vmatmul.mubr.f32.gmra.mxu0 %v814
  %v1019 = vpop.f32.mrf.mxu0
  %v1020 = vadd.f32 %v744, %v1019
  %v1021 = vpop.f32.mrf.mxu0
  %1022 = vmatprep.mubr.f32.mxu0 0.0
  %1023 = vmatmul.mubr.f32.gmra.mxu0 %v817
  %v1024 = vpop.f32.mrf.mxu0
  %v1025 = vadd.f32 %v744, %v1024
  %v1026 = vpop.f32.mrf.mxu0
  %1027 = vmatprep.mubr.f32.mxu0 0.0
  %1028 = vmatmul.mubr.f32.gmra.mxu0 %v820
  %v1029 = vpop.f32.mrf.mxu0
  %v1030 = vadd.f32 %v744, %v1029
  %v1031 = vpop.f32.mrf.mxu0
  %1032 = vmatprep.mubr.f32.mxu0 0.0
  %1033 = vmatmul.mubr.f32.gmra.mxu0 %v823
  %v1034 = vpop.f32.mrf.mxu0
  %v1035 = vadd.f32 %v744, %v1034
  %v1036 = vpop.f32.mrf.mxu0
  %1037 = vmatprep.mubr.f32.mxu0 0.0
  %1038 = vmatmul.mubr.f32.gmra.mxu0 %v826
  %v1039 = vpop.f32.mrf.mxu0
  %v1040 = vadd.f32 %v744, %v1039
  %v1041 = vpop.f32.mrf.mxu0
  %1042 = vmatprep.mubr.f32.mxu0 0.0
  %1043 = vmatmul.mubr.f32.gmra.mxu0 %v829
  %v1044 = vpop.f32.mrf.mxu0
  %v1045 = vadd.f32 %v744, %v1044
  %v1046 = vpop.f32.mrf.mxu0
  %1047 = vmatprep.mubr.f32.mxu0 0.0
  %1048 = vmatmul.mubr.f32.gmra.mxu0 %v832
  %v1049 = vpop.f32.mrf.mxu0
  %v1050 = vadd.f32 %v744, %v1049
  %v1051 = vpop.f32.mrf.mxu0
  %1052 = vmatprep.mubr.f32.mxu0 0.0
  %1053 = vmatmul.mubr.f32.gmra.mxu0 %v835
  %v1054 = vpop.f32.mrf.mxu0
  %v1055 = vadd.f32 %v744, %v1054
  %v1056 = vpop.f32.mrf.mxu0
  %1057 = vmatprep.mubr.f32.mxu0 0.0
  %1058 = vmatmul.mubr.f32.gmra.mxu0 %v838
  %v1059 = vpop.f32.mrf.mxu0
  %v1060 = vadd.f32 %v744, %v1059
  %v1061 = vpop.f32.mrf.mxu0
  %1062 = vmatprep.mubr.f32.mxu0 0.0
  %1063 = vmatmul.mubr.f32.gmra.mxu0 %v841
  %v1064 = vpop.f32.mrf.mxu0
  %v1065 = vadd.f32 %v744, %v1064
  %v1066 = vpop.f32.mrf.mxu0
  %1067 = vdwg.mxu0
  %v1068 = vmax.f32 %v910, 0.0
  %v1069 = vmax.f32 %v915, 0.0
  %v1070 = vmax.f32 %v920, 0.0
  %v1071 = vmax.f32 %v925, 0.0
  %v1072 = vmax.f32 %v930, 0.0
  %v1073 = vmax.f32 %v935, 0.0
  %v1074 = vmax.f32 %v940, 0.0
  %v1075 = vmax.f32 %v945, 0.0
  %v1076 = vmax.f32 %v950, 0.0
  %v1077 = vmax.f32 %v955, 0.0
  %v1078 = vmax.f32 %v960, 0.0
  %v1079 = vmax.f32 %v965, 0.0
  %v1080 = vmax.f32 %v970, 0.0
  %v1081 = vmax.f32 %v975, 0.0
  %v1082 = vmax.f32 %v980, 0.0
  %v1083 = vmax.f32 %v985, 0.0
  %v1084 = vmax.f32 %v990, 0.0
  %v1085 = vmax.f32 %v995, 0.0
  %v1086 = vmax.f32 %v1000, 0.0
  %v1087 = vmax.f32 %v1005, 0.0
  %v1088 = vmax.f32 %v1010, 0.0
  %v1089 = vmax.f32 %v1015, 0.0
  %v1090 = vmax.f32 %v1020, 0.0
  %v1091 = vmax.f32 %v1025, 0.0
  %v1092 = vmax.f32 %v1030, 0.0
  %v1093 = vmax.f32 %v1035, 0.0
  %v1094 = vmax.f32 %v1040, 0.0
  %v1095 = vmax.f32 %v1045, 0.0
  %v1096 = vmax.f32 %v1050, 0.0
  %v1097 = vmax.f32 %v1055, 0.0
  %v1098 = vmax.f32 %v1060, 0.0
  %v1099 = vmax.f32 %v1065, 0.0
  %v1100 = vld [vmem:[%s5] sm:$0xff]
  %v1101 = vld [vmem:[%s5 + $0x8] sm:$0xff]
  %v1102 = vld [vmem:[%s5 + $0x10] sm:$0xff]
  %v1103 = vld [vmem:[%s5 + $0x18] sm:$0xff]
  %vm1104 = vcmask 261120
  %v1106 = vsel %vm1104, %v1068, 0
  %v1109 = vsel %vm1104, %v1069, 0
  %v1112 = vsel %vm1104, %v1070, 0
  %v1115 = vsel %vm1104, %v1071, 0
  %v1118 = vsel %vm1104, %v1072, 0
  %v1121 = vsel %vm1104, %v1073, 0
  %v1124 = vsel %vm1104, %v1074, 0
  %v1127 = vsel %vm1104, %v1075, 0
  %v1130 = vsel %vm1104, %v1076, 0
  %v1133 = vsel %vm1104, %v1077, 0
  %v1136 = vsel %vm1104, %v1078, 0
  %v1139 = vsel %vm1104, %v1079, 0
  %v1142 = vsel %vm1104, %v1080, 0
  %v1145 = vsel %vm1104, %v1081, 0
  %v1148 = vsel %vm1104, %v1082, 0
  %v1151 = vsel %vm1104, %v1083, 0
  %v1154 = vsel %vm1104, %v1084, 0
  %v1157 = vsel %vm1104, %v1085, 0
  %v1160 = vsel %vm1104, %v1086, 0
  %v1163 = vsel %vm1104, %v1087, 0
  %v1166 = vsel %vm1104, %v1088, 0
  %v1169 = vsel %vm1104, %v1089, 0
  %v1172 = vsel %vm1104, %v1090, 0
  %v1175 = vsel %vm1104, %v1091, 0
  %v1178 = vsel %vm1104, %v1092, 0
  %v1181 = vsel %vm1104, %v1093, 0
  %v1184 = vsel %vm1104, %v1094, 0
  %v1187 = vsel %vm1104, %v1095, 0
  %v1190 = vsel %vm1104, %v1096, 0
  %v1193 = vsel %vm1104, %v1097, 0
  %v1196 = vsel %vm1104, %v1098, 0
  %v1199 = vsel %vm1104, %v1099, 0
  %1201 = vmatprep.subr.mxu0 0.0
  %1202 = vmatpush1.msra.mxu0 0.0
  %1203 = vmatprep.subr.mxu0 0.0
  %1204 = vmatpush1.msra.mxu0 0.0
  %1205 = vmatprep.subr.mxu0 0.0
  %1206 = vmatpush1.msra.mxu0 0.0
  %1207 = vmatprep.subr.mxu0 0.0
  %1208 = vmatpush1.msra.mxu0 0.0
  %1209 = vmatprep.subr.mxu0 0.0
  %1210 = vmatpush1.msra.mxu0 0.0
  %1211 = vmatprep.subr.mxu0 0.0
  %1212 = vmatpush1.msra.mxu0 0.0
  %1213 = vmatprep.subr.mxu0 0.0
  %1214 = vmatpush1.msra.mxu0 0.0
  %1215 = vmatprep.subr.mxu0 0.0
  %1216 = vmatpush1.msra.mxu0 0.0
  %1217 = vmatprep.subr.mxu0 0.0
  %1218 = vmatpush1.msra.mxu0 0.0
  %1219 = vmatprep.subr.mxu0 0.0
  %1220 = vmatpush1.msra.mxu0 0.0
  %1221 = vmatprep.subr.mxu0 0.0
  %1222 = vmatpush1.msra.mxu0 0.0
  %1223 = vmatprep.subr.mxu0 0.0
  %1224 = vmatpush1.msra.mxu0 0.0
  %1225 = vmatprep.subr.mxu0 0.0
  %1226 = vmatpush1.msra.mxu0 %v1103
  %1227 = vmatprep.subr.mxu0 0.0
  %1228 = vmatpush1.msra.mxu0 %v1102
  %1229 = vmatprep.subr.mxu0 0.0
  %1230 = vmatpush1.msra.mxu0 %v1101
  %1231 = vmatprep.subr.mxu0 0.0
  %1232 = vmatpush1.msra.mxu0 %v1100
  %1233 = vmatprep.subr.mxu0 0.0
  %1234 = vmatpush2.msra.mxu0 0.0
  %1235 = vmatprep.subr.mxu0 0.0
  %1236 = vmatpush2.msra.mxu0 0.0
  %1237 = vmatprep.subr.mxu0 0.0
  %1238 = vmatpush2.msra.mxu0 0.0
  %1239 = vmatprep.subr.mxu0 0.0
  %1240 = vmatpush2.msra.mxu0 0.0
  %1241 = vmatprep.subr.mxu0 0.0
  %1242 = vmatpush2.msra.mxu0 0.0
  %1243 = vmatprep.subr.mxu0 0.0
  %1244 = vmatpush2.msra.mxu0 0.0
  %1245 = vmatprep.subr.mxu0 0.0
  %1246 = vmatpush2.msra.mxu0 0.0
  %1247 = vmatprep.subr.mxu0 0.0
  %1248 = vmatpush2.msra.mxu0 0.0
  %1249 = vmatprep.subr.mxu0 0.0
  %1250 = vmatpush2.msra.mxu0 0.0
  %1251 = vmatprep.subr.mxu0 0.0
  %1252 = vmatpush2.msra.mxu0 0.0
  %1253 = vmatprep.subr.mxu0 0.0
  %1254 = vmatpush2.msra.mxu0 0.0
  %1255 = vmatprep.subr.mxu0 0.0
  %1256 = vmatpush2.msra.mxu0 0.0
  %1257 = vmatprep.subr.mxu0 0.0
  %1258 = vmatpush2.msra.mxu0 0.0
  %1259 = vmatprep.subr.mxu0 0.0
  %1260 = vmatpush2.msra.mxu0 0.0
  %1261 = vmatprep.subr.mxu0 0.0
  %1262 = vmatpush2.msra.mxu0 0.0
  %1263 = vmatprep.subr.mxu0 0.0
  %1264 = vmatpush2.msra.mxu0 0.0
  %1265 = vmatprep.mubr.f32.mxu0 0.0
  %1266 = vmatmul.mubr.f32.gmra.mxu0 %v1106
  %v1267 = vpop.f32.mrf.mxu0
  %v1268 = vadd.f32 0.0, %v1267
  %v1269 = vpop.f32.mrf.mxu0
  %1270 = vmatprep.mubr.f32.mxu0 0.0
  %1271 = vmatmul.mubr.f32.gmra.mxu0 %v1109
  %v1272 = vpop.f32.mrf.mxu0
  %v1273 = vadd.f32 0.0, %v1272
  %v1274 = vpop.f32.mrf.mxu0
  %1275 = vmatprep.mubr.f32.mxu0 0.0
  %1276 = vmatmul.mubr.f32.gmra.mxu0 %v1112
  %v1277 = vpop.f32.mrf.mxu0
  %v1278 = vadd.f32 0.0, %v1277
  %v1279 = vpop.f32.mrf.mxu0
  %1280 = vmatprep.mubr.f32.mxu0 0.0
  %1281 = vmatmul.mubr.f32.gmra.mxu0 %v1115
  %v1282 = vpop.f32.mrf.mxu0
  %v1283 = vadd.f32 0.0, %v1282
  %v1284 = vpop.f32.mrf.mxu0
  %1285 = vmatprep.mubr.f32.mxu0 0.0
  %1286 = vmatmul.mubr.f32.gmra.mxu0 %v1118
  %v1287 = vpop.f32.mrf.mxu0
  %v1288 = vadd.f32 0.0, %v1287
  %v1289 = vpop.f32.mrf.mxu0
  %1290 = vmatprep.mubr.f32.mxu0 0.0
  %1291 = vmatmul.mubr.f32.gmra.mxu0 %v1121
  %v1292 = vpop.f32.mrf.mxu0
  %v1293 = vadd.f32 0.0, %v1292
  %v1294 = vpop.f32.mrf.mxu0
  %1295 = vmatprep.mubr.f32.mxu0 0.0
  %1296 = vmatmul.mubr.f32.gmra.mxu0 %v1124
  %v1297 = vpop.f32.mrf.mxu0
  %v1298 = vadd.f32 0.0, %v1297
  %v1299 = vpop.f32.mrf.mxu0
  %1300 = vmatprep.mubr.f32.mxu0 0.0
  %1301 = vmatmul.mubr.f32.gmra.mxu0 %v1127
  %v1302 = vpop.f32.mrf.mxu0
  %v1303 = vadd.f32 0.0, %v1302
  %v1304 = vpop.f32.mrf.mxu0
  %1305 = vmatprep.mubr.f32.mxu0 0.0
  %1306 = vmatmul.mubr.f32.gmra.mxu0 %v1130
  %v1307 = vpop.f32.mrf.mxu0
  %v1308 = vadd.f32 0.0, %v1307
  %v1309 = vpop.f32.mrf.mxu0
  %1310 = vmatprep.mubr.f32.mxu0 0.0
  %1311 = vmatmul.mubr.f32.gmra.mxu0 %v1133
  %v1312 = vpop.f32.mrf.mxu0
  %v1313 = vadd.f32 0.0, %v1312
  %v1314 = vpop.f32.mrf.mxu0
  %1315 = vmatprep.mubr.f32.mxu0 0.0
  %1316 = vmatmul.mubr.f32.gmra.mxu0 %v1136
  %v1317 = vpop.f32.mrf.mxu0
  %v1318 = vadd.f32 0.0, %v1317
  %v1319 = vpop.f32.mrf.mxu0
  %1320 = vmatprep.mubr.f32.mxu0 0.0
  %1321 = vmatmul.mubr.f32.gmra.mxu0 %v1139
  %v1322 = vpop.f32.mrf.mxu0
  %v1323 = vadd.f32 0.0, %v1322
  %v1324 = vpop.f32.mrf.mxu0
  %1325 = vmatprep.mubr.f32.mxu0 0.0
  %1326 = vmatmul.mubr.f32.gmra.mxu0 %v1142
  %v1327 = vpop.f32.mrf.mxu0
  %v1328 = vadd.f32 0.0, %v1327
  %v1329 = vpop.f32.mrf.mxu0
  %1330 = vmatprep.mubr.f32.mxu0 0.0
  %1331 = vmatmul.mubr.f32.gmra.mxu0 %v1145
  %v1332 = vpop.f32.mrf.mxu0
  %v1333 = vadd.f32 0.0, %v1332
  %v1334 = vpop.f32.mrf.mxu0
  %1335 = vmatprep.mubr.f32.mxu0 0.0
  %1336 = vmatmul.mubr.f32.gmra.mxu0 %v1148
  %v1337 = vpop.f32.mrf.mxu0
  %v1338 = vadd.f32 0.0, %v1337
  %v1339 = vpop.f32.mrf.mxu0
  %1340 = vmatprep.mubr.f32.mxu0 0.0
  %1341 = vmatmul.mubr.f32.gmra.mxu0 %v1151
  %v1342 = vpop.f32.mrf.mxu0
  %v1343 = vadd.f32 0.0, %v1342
  %v1344 = vpop.f32.mrf.mxu0
  %1345 = vmatprep.mubr.f32.mxu0 0.0
  %1346 = vmatmul.mubr.f32.gmra.mxu0 %v1154
  %v1347 = vpop.f32.mrf.mxu0
  %v1348 = vadd.f32 0.0, %v1347
  %v1349 = vpop.f32.mrf.mxu0
  %1350 = vmatprep.mubr.f32.mxu0 0.0
  %1351 = vmatmul.mubr.f32.gmra.mxu0 %v1157
  %v1352 = vpop.f32.mrf.mxu0
  %v1353 = vadd.f32 0.0, %v1352
  %v1354 = vpop.f32.mrf.mxu0
  %1355 = vmatprep.mubr.f32.mxu0 0.0
  %1356 = vmatmul.mubr.f32.gmra.mxu0 %v1160
  %v1357 = vpop.f32.mrf.mxu0
  %v1358 = vadd.f32 0.0, %v1357
  %v1359 = vpop.f32.mrf.mxu0
  %1360 = vmatprep.mubr.f32.mxu0 0.0
  %1361 = vmatmul.mubr.f32.gmra.mxu0 %v1163
  %v1362 = vpop.f32.mrf.mxu0
  %v1363 = vadd.f32 0.0, %v1362
  %v1364 = vpop.f32.mrf.mxu0
  %1365 = vmatprep.mubr.f32.mxu0 0.0
  %1366 = vmatmul.mubr.f32.gmra.mxu0 %v1166
  %v1367 = vpop.f32.mrf.mxu0
  %v1368 = vadd.f32 0.0, %v1367
  %v1369 = vpop.f32.mrf.mxu0
  %1370 = vmatprep.mubr.f32.mxu0 0.0
  %1371 = vmatmul.mubr.f32.gmra.mxu0 %v1169
  %v1372 = vpop.f32.mrf.mxu0
  %v1373 = vadd.f32 0.0, %v1372
  %v1374 = vpop.f32.mrf.mxu0
  %1375 = vmatprep.mubr.f32.mxu0 0.0
  %1376 = vmatmul.mubr.f32.gmra.mxu0 %v1172
  %v1377 = vpop.f32.mrf.mxu0
  %v1378 = vadd.f32 0.0, %v1377
  %v1379 = vpop.f32.mrf.mxu0
  %1380 = vmatprep.mubr.f32.mxu0 0.0
  %1381 = vmatmul.mubr.f32.gmra.mxu0 %v1175
  %v1382 = vpop.f32.mrf.mxu0
  %v1383 = vadd.f32 0.0, %v1382
  %v1384 = vpop.f32.mrf.mxu0
  %1385 = vmatprep.mubr.f32.mxu0 0.0
  %1386 = vmatmul.mubr.f32.gmra.mxu0 %v1178
  %v1387 = vpop.f32.mrf.mxu0
  %v1388 = vadd.f32 0.0, %v1387
  %v1389 = vpop.f32.mrf.mxu0
  %1390 = vmatprep.mubr.f32.mxu0 0.0
  %1391 = vmatmul.mubr.f32.gmra.mxu0 %v1181
  %v1392 = vpop.f32.mrf.mxu0
  %v1393 = vadd.f32 0.0, %v1392
  %v1394 = vpop.f32.mrf.mxu0
  %1395 = vmatprep.mubr.f32.mxu0 0.0
  %1396 = vmatmul.mubr.f32.gmra.mxu0 %v1184
  %v1397 = vpop.f32.mrf.mxu0
  %v1398 = vadd.f32 0.0, %v1397
  %v1399 = vpop.f32.mrf.mxu0
  %1400 = vmatprep.mubr.f32.mxu0 0.0
  %1401 = vmatmul.mubr.f32.gmra.mxu0 %v1187
  %v1402 = vpop.f32.mrf.mxu0
  %v1403 = vadd.f32 0.0, %v1402
  %v1404 = vpop.f32.mrf.mxu0
  %1405 = vmatprep.mubr.f32.mxu0 0.0
  %1406 = vmatmul.mubr.f32.gmra.mxu0 %v1190
  %v1407 = vpop.f32.mrf.mxu0
  %v1408 = vadd.f32 0.0, %v1407
  %v1409 = vpop.f32.mrf.mxu0
  %1410 = vmatprep.mubr.f32.mxu0 0.0
  %1411 = vmatmul.mubr.f32.gmra.mxu0 %v1193
  %v1412 = vpop.f32.mrf.mxu0
  %v1413 = vadd.f32 0.0, %v1412
  %v1414 = vpop.f32.mrf.mxu0
  %1415 = vmatprep.mubr.f32.mxu0 0.0
  %1416 = vmatmul.mubr.f32.gmra.mxu0 %v1196
  %v1417 = vpop.f32.mrf.mxu0
  %v1418 = vadd.f32 0.0, %v1417
  %v1419 = vpop.f32.mrf.mxu0
  %1420 = vmatprep.mubr.f32.mxu0 0.0
  %1421 = vmatmul.mubr.f32.gmra.mxu0 %v1199
  %v1422 = vpop.f32.mrf.mxu0
  %v1423 = vadd.f32 0.0, %v1422
  %v1424 = vpop.f32.mrf.mxu0
  %1425 = vdwg.mxu0
  %v1426 = vmul.f32 %v1268, %v549
  %v1427 = vmul.f32 %v1273, %v554
  %v1428 = vmul.f32 %v1278, %v559
  %v1429 = vmul.f32 %v1283, %v564
  %v1430 = vmul.f32 %v1288, %v569
  %v1431 = vmul.f32 %v1293, %v574
  %v1432 = vmul.f32 %v1298, %v579
  %v1433 = vmul.f32 %v1303, %v584
  %v1434 = vmul.f32 %v1308, %v589
  %v1435 = vmul.f32 %v1313, %v594
  %v1436 = vmul.f32 %v1318, %v599
  %v1437 = vmul.f32 %v1323, %v604
  %v1438 = vmul.f32 %v1328, %v609
  %v1439 = vmul.f32 %v1333, %v614
  %v1440 = vmul.f32 %v1338, %v619
  %v1441 = vmul.f32 %v1343, %v624
  %v1442 = vmul.f32 %v1348, %v629
  %v1443 = vmul.f32 %v1353, %v634
  %v1444 = vmul.f32 %v1358, %v639
  %v1445 = vmul.f32 %v1363, %v644
  %v1446 = vmul.f32 %v1368, %v649
  %v1447 = vmul.f32 %v1373, %v654
  %v1448 = vmul.f32 %v1378, %v659
  %v1449 = vmul.f32 %v1383, %v664
  %v1450 = vmul.f32 %v1388, %v669
  %v1451 = vmul.f32 %v1393, %v674
  %v1452 = vmul.f32 %v1398, %v679
  %v1453 = vmul.f32 %v1403, %v684
  %v1454 = vmul.f32 %v1408, %v689
  %v1455 = vmul.f32 %v1413, %v694
  %v1456 = vmul.f32 %v1418, %v699
  %v1457 = vmul.f32 %v1423, %v704
  %v1458 = vpack.c.bf16 %v1427, %v1426
  %v1459 = vpack.c.bf16 %v1429, %v1428
  %v1460 = vpack.c.bf16 %v1431, %v1430
  %v1461 = vpack.c.bf16 %v1433, %v1432
  %v1462 = vpack.c.bf16 %v1435, %v1434
  %v1463 = vpack.c.bf16 %v1437, %v1436
  %v1464 = vpack.c.bf16 %v1439, %v1438
  %v1465 = vpack.c.bf16 %v1441, %v1440
  %v1466 = vpack.c.bf16 %v1443, %v1442
  %v1467 = vpack.c.bf16 %v1445, %v1444
  %v1468 = vpack.c.bf16 %v1447, %v1446
  %v1469 = vpack.c.bf16 %v1449, %v1448
  %v1470 = vpack.c.bf16 %v1451, %v1450
  %v1471 = vpack.c.bf16 %v1453, %v1452
  %v1472 = vpack.c.bf16 %v1455, %v1454
  %v1473 = vpack.c.bf16 %v1457, %v1456
  %1474 = vmatprep.subr.bf16.mxu0 0
  %1475 = vmatpush1.bf16.msra.mxu0 %v1465
  %1476 = vmatprep.subr.bf16.mxu0 0
  %1477 = vmatpush1.bf16.msra.mxu0 %v1464
  %1478 = vmatprep.subr.bf16.mxu0 0
  %1479 = vmatpush1.bf16.msra.mxu0 %v1463
  %1480 = vmatprep.subr.bf16.mxu0 0
  %1481 = vmatpush1.bf16.msra.mxu0 %v1462
  %1482 = vmatprep.subr.bf16.mxu0 0
  %1483 = vmatpush1.bf16.msra.mxu0 %v1461
  %1484 = vmatprep.subr.bf16.mxu0 0
  %1485 = vmatpush1.bf16.msra.mxu0 %v1460
  %1486 = vmatprep.subr.bf16.mxu0 0
  %1487 = vmatpush1.bf16.msra.mxu0 %v1459
  %1488 = vmatprep.subr.bf16.mxu0 0
  %1489 = vmatpush1.bf16.msra.mxu0 %v1458
  %1490 = vmatprep.subr.bf16.mxu0 0
  %1491 = vmatpush2.bf16.msra.mxu0 %v1473
  %1492 = vmatprep.subr.bf16.mxu0 0
  %1493 = vmatpush2.bf16.msra.mxu0 %v1472
  %1494 = vmatprep.subr.bf16.mxu0 0
  %1495 = vmatpush2.bf16.msra.mxu0 %v1471
  %1496 = vmatprep.subr.bf16.mxu0 0
  %1497 = vmatpush2.bf16.msra.mxu0 %v1470
  %1498 = vmatprep.subr.bf16.mxu0 0
  %1499 = vmatpush2.bf16.msra.mxu0 %v1469
  %1500 = vmatprep.subr.bf16.mxu0 0
  %1501 = vmatpush2.bf16.msra.mxu0 %v1468
  %1502 = vmatprep.subr.bf16.mxu0 0
  %1503 = vmatpush2.bf16.msra.mxu0 %v1467
  %1504 = vmatprep.subr.bf16.mxu0 0
  %1505 = vmatpush2.bf16.msra.mxu0 %v1466
  %1506 = vmatprep.mubr.bf16.mxu0 %v226
  %1507 = vmatmul.mubr.bf16.gmra.mxu0 %v225
  %v1508 = vpop.f32.mrf.mxu0
  %v1509 = vadd.f32 0.0, %v1508
  %v1510 = vpop.f32.mrf.mxu0
  %v1511 = vpop.f32.mrf.mxu0
  %v1512 = vadd.f32 0.0, %v1511
  %v1513 = vpop.f32.mrf.mxu0
  %1514 = vmatprep.mubr.bf16.mxu0 %v228
  %1515 = vmatmul.mubr.bf16.gmra.mxu0 %v227
  %v1516 = vpop.f32.mrf.mxu0
  %v1517 = vadd.f32 0.0, %v1516
  %v1518 = vpop.f32.mrf.mxu0
  %v1519 = vpop.f32.mrf.mxu0
  %v1520 = vadd.f32 0.0, %v1519
  %v1521 = vpop.f32.mrf.mxu0
  %1522 = vmatprep.mubr.bf16.mxu0 %v230
  %1523 = vmatmul.mubr.bf16.gmra.mxu0 %v229
  %v1524 = vpop.f32.mrf.mxu0
  %v1525 = vadd.f32 0.0, %v1524
  %v1526 = vpop.f32.mrf.mxu0
  %v1527 = vpop.f32.mrf.mxu0
  %v1528 = vadd.f32 0.0, %v1527
  %v1529 = vpop.f32.mrf.mxu0
  %1530 = vmatprep.mubr.bf16.mxu0 %v232
  %1531 = vmatmul.mubr.bf16.gmra.mxu0 %v231
  %v1532 = vpop.f32.mrf.mxu0
  %v1533 = vadd.f32 0.0, %v1532
  %v1534 = vpop.f32.mrf.mxu0
  %v1535 = vpop.f32.mrf.mxu0
  %v1536 = vadd.f32 0.0, %v1535
  %v1537 = vpop.f32.mrf.mxu0
  %1538 = vmatprep.mubr.bf16.mxu0 %v234
  %1539 = vmatmul.mubr.bf16.gmra.mxu0 %v233
  %v1540 = vpop.f32.mrf.mxu0
  %v1541 = vadd.f32 0.0, %v1540
  %v1542 = vpop.f32.mrf.mxu0
  %v1543 = vpop.f32.mrf.mxu0
  %v1544 = vadd.f32 0.0, %v1543
  %v1545 = vpop.f32.mrf.mxu0
  %1546 = vmatprep.mubr.bf16.mxu0 %v236
  %1547 = vmatmul.mubr.bf16.gmra.mxu0 %v235
  %v1548 = vpop.f32.mrf.mxu0
  %v1549 = vadd.f32 0.0, %v1548
  %v1550 = vpop.f32.mrf.mxu0
  %v1551 = vpop.f32.mrf.mxu0
  %v1552 = vadd.f32 0.0, %v1551
  %v1553 = vpop.f32.mrf.mxu0
  %1554 = vmatprep.mubr.bf16.mxu0 %v238
  %1555 = vmatmul.mubr.bf16.gmra.mxu0 %v237
  %v1556 = vpop.f32.mrf.mxu0
  %v1557 = vadd.f32 0.0, %v1556
  %v1558 = vpop.f32.mrf.mxu0
  %v1559 = vpop.f32.mrf.mxu0
  %v1560 = vadd.f32 0.0, %v1559
  %v1561 = vpop.f32.mrf.mxu0
  %1562 = vmatprep.mubr.bf16.mxu0 %v240
  %1563 = vmatmul.mubr.bf16.gmra.mxu0 %v239
  %v1564 = vpop.f32.mrf.mxu0
  %v1565 = vadd.f32 0.0, %v1564
  %v1566 = vpop.f32.mrf.mxu0
  %v1567 = vpop.f32.mrf.mxu0
  %v1568 = vadd.f32 0.0, %v1567
  %v1569 = vpop.f32.mrf.mxu0
  %1570 = vmatprep.mubr.bf16.mxu0 %v242
  %1571 = vmatmul.mubr.bf16.gmra.mxu0 %v241
  %v1572 = vpop.f32.mrf.mxu0
  %v1573 = vadd.f32 0.0, %v1572
  %v1574 = vpop.f32.mrf.mxu0
  %v1575 = vpop.f32.mrf.mxu0
  %v1576 = vadd.f32 0.0, %v1575
  %v1577 = vpop.f32.mrf.mxu0
  %1578 = vmatprep.mubr.bf16.mxu0 %v244
  %1579 = vmatmul.mubr.bf16.gmra.mxu0 %v243
  %v1580 = vpop.f32.mrf.mxu0
  %v1581 = vadd.f32 0.0, %v1580
  %v1582 = vpop.f32.mrf.mxu0
  %v1583 = vpop.f32.mrf.mxu0
  %v1584 = vadd.f32 0.0, %v1583
  %v1585 = vpop.f32.mrf.mxu0
  %1586 = vmatprep.mubr.bf16.mxu0 %v246
  %1587 = vmatmul.mubr.bf16.gmra.mxu0 %v245
  %v1588 = vpop.f32.mrf.mxu0
  %v1589 = vadd.f32 0.0, %v1588
  %v1590 = vpop.f32.mrf.mxu0
  %v1591 = vpop.f32.mrf.mxu0
  %v1592 = vadd.f32 0.0, %v1591
  %v1593 = vpop.f32.mrf.mxu0
  %1594 = vmatprep.mubr.bf16.mxu0 %v248
  %1595 = vmatmul.mubr.bf16.gmra.mxu0 %v247
  %v1596 = vpop.f32.mrf.mxu0
  %v1597 = vadd.f32 0.0, %v1596
  %v1598 = vpop.f32.mrf.mxu0
  %v1599 = vpop.f32.mrf.mxu0
  %v1600 = vadd.f32 0.0, %v1599
  %v1601 = vpop.f32.mrf.mxu0
  %1602 = vmatprep.mubr.bf16.mxu0 %v250
  %1603 = vmatmul.mubr.bf16.gmra.mxu0 %v249
  %v1604 = vpop.f32.mrf.mxu0
  %v1605 = vadd.f32 0.0, %v1604
  %v1606 = vpop.f32.mrf.mxu0
  %v1607 = vpop.f32.mrf.mxu0
  %v1608 = vadd.f32 0.0, %v1607
  %v1609 = vpop.f32.mrf.mxu0
  %1610 = vmatprep.mubr.bf16.mxu0 %v252
  %1611 = vmatmul.mubr.bf16.gmra.mxu0 %v251
  %v1612 = vpop.f32.mrf.mxu0
  %v1613 = vadd.f32 0.0, %v1612
  %v1614 = vpop.f32.mrf.mxu0
  %v1615 = vpop.f32.mrf.mxu0
  %v1616 = vadd.f32 0.0, %v1615
  %v1617 = vpop.f32.mrf.mxu0
  %1618 = vmatprep.mubr.bf16.mxu0 %v254
  %1619 = vmatmul.mubr.bf16.gmra.mxu0 %v253
  %v1620 = vpop.f32.mrf.mxu0
  %v1621 = vadd.f32 0.0, %v1620
  %v1622 = vpop.f32.mrf.mxu0
  %v1623 = vpop.f32.mrf.mxu0
  %v1624 = vadd.f32 0.0, %v1623
  %v1625 = vpop.f32.mrf.mxu0
  %1626 = vmatprep.mubr.bf16.mxu0 %v256
  %1627 = vmatmul.mubr.bf16.gmra.mxu0 %v255
  %v1628 = vpop.f32.mrf.mxu0
  %v1629 = vadd.f32 0.0, %v1628
  %v1630 = vpop.f32.mrf.mxu0
  %v1631 = vpop.f32.mrf.mxu0
  %v1632 = vadd.f32 0.0, %v1631
  %v1633 = vpop.f32.mrf.mxu0
  %1634 = vdwg.mxu0
  %v1635 = vmul.f32 %v1509, %v549
  %v1636 = vmul.f32 %v1512, %v554
  %v1637 = vmul.f32 %v1517, %v559
  %v1638 = vmul.f32 %v1520, %v564
  %v1639 = vmul.f32 %v1525, %v569
  %v1640 = vmul.f32 %v1528, %v574
  %v1641 = vmul.f32 %v1533, %v579
  %v1642 = vmul.f32 %v1536, %v584
  %v1643 = vmul.f32 %v1541, %v589
  %v1644 = vmul.f32 %v1544, %v594
  %v1645 = vmul.f32 %v1549, %v599
  %v1646 = vmul.f32 %v1552, %v604
  %v1647 = vmul.f32 %v1557, %v609
  %v1648 = vmul.f32 %v1560, %v614
  %v1649 = vmul.f32 %v1565, %v619
  %v1650 = vmul.f32 %v1568, %v624
  %v1651 = vmul.f32 %v1573, %v629
  %v1652 = vmul.f32 %v1576, %v634
  %v1653 = vmul.f32 %v1581, %v639
  %v1654 = vmul.f32 %v1584, %v644
  %v1655 = vmul.f32 %v1589, %v649
  %v1656 = vmul.f32 %v1592, %v654
  %v1657 = vmul.f32 %v1597, %v659
  %v1658 = vmul.f32 %v1600, %v664
  %v1659 = vmul.f32 %v1605, %v669
  %v1660 = vmul.f32 %v1608, %v674
  %v1661 = vmul.f32 %v1613, %v679
  %v1662 = vmul.f32 %v1616, %v684
  %v1663 = vmul.f32 %v1621, %v689
  %v1664 = vmul.f32 %v1624, %v694
  %v1665 = vmul.f32 %v1629, %v699
  %v1666 = vmul.f32 %v1632, %v704
  %v1667 = vld [vmem:[%s6] sm:$0x1]
  %v1669 = vlaneseq
  %v1670 = vshrl.u32 %v1669, 7
  %v1671 = vsub.s32 0, %v1670
  %v1672 = vrot.slane %v1667, %v1671
  %v1674 = vadd.f32 %v1635, %v1672
  %v1675 = vadd.f32 %v1636, %v1672
  %v1676 = vadd.f32 %v1637, %v1672
  %v1677 = vadd.f32 %v1638, %v1672
  %v1678 = vadd.f32 %v1639, %v1672
  %v1679 = vadd.f32 %v1640, %v1672
  %v1680 = vadd.f32 %v1641, %v1672
  %v1681 = vadd.f32 %v1642, %v1672
  %v1682 = vadd.f32 %v1643, %v1672
  %v1683 = vadd.f32 %v1644, %v1672
  %v1684 = vadd.f32 %v1645, %v1672
  %v1685 = vadd.f32 %v1646, %v1672
  %v1686 = vadd.f32 %v1647, %v1672
  %v1687 = vadd.f32 %v1648, %v1672
  %v1688 = vadd.f32 %v1649, %v1672
  %v1689 = vadd.f32 %v1650, %v1672
  %v1690 = vadd.f32 %v1651, %v1672
  %v1691 = vadd.f32 %v1652, %v1672
  %v1692 = vadd.f32 %v1653, %v1672
  %v1693 = vadd.f32 %v1654, %v1672
  %v1694 = vadd.f32 %v1655, %v1672
  %v1695 = vadd.f32 %v1656, %v1672
  %v1696 = vadd.f32 %v1657, %v1672
  %v1697 = vadd.f32 %v1658, %v1672
  %v1698 = vadd.f32 %v1659, %v1672
  %v1699 = vadd.f32 %v1660, %v1672
  %v1700 = vadd.f32 %v1661, %v1672
  %v1701 = vadd.f32 %v1662, %v1672
  %v1702 = vadd.f32 %v1663, %v1672
  %v1703 = vadd.f32 %v1664, %v1672
  %v1704 = vadd.f32 %v1665, %v1672
  %v1705 = vadd.f32 %v1666, %v1672
  %v1706 = vmax.f32 %v1674, 0.0
  %v1707 = vmax.f32 %v1675, 0.0
  %v1708 = vmax.f32 %v1676, 0.0
  %v1709 = vmax.f32 %v1677, 0.0
  %v1710 = vmax.f32 %v1678, 0.0
  %v1711 = vmax.f32 %v1679, 0.0
  %v1712 = vmax.f32 %v1680, 0.0
  %v1713 = vmax.f32 %v1681, 0.0
  %v1714 = vmax.f32 %v1682, 0.0
  %v1715 = vmax.f32 %v1683, 0.0
  %v1716 = vmax.f32 %v1684, 0.0
  %v1717 = vmax.f32 %v1685, 0.0
  %v1718 = vmax.f32 %v1686, 0.0
  %v1719 = vmax.f32 %v1687, 0.0
  %v1720 = vmax.f32 %v1688, 0.0
  %v1721 = vmax.f32 %v1689, 0.0
  %v1722 = vmax.f32 %v1690, 0.0
  %v1723 = vmax.f32 %v1691, 0.0
  %v1724 = vmax.f32 %v1692, 0.0
  %v1725 = vmax.f32 %v1693, 0.0
  %v1726 = vmax.f32 %v1694, 0.0
  %v1727 = vmax.f32 %v1695, 0.0
  %v1728 = vmax.f32 %v1696, 0.0
  %v1729 = vmax.f32 %v1697, 0.0
  %v1730 = vmax.f32 %v1698, 0.0
  %v1731 = vmax.f32 %v1699, 0.0
  %v1732 = vmax.f32 %v1700, 0.0
  %v1733 = vmax.f32 %v1701, 0.0
  %v1734 = vmax.f32 %v1702, 0.0
  %v1735 = vmax.f32 %v1703, 0.0
  %v1736 = vmax.f32 %v1704, 0.0
  %v1737 = vmax.f32 %v1705, 0.0
  %v1738 = vld [vmem:[%s7] sm:$0xff]
  %v1739 = vld [vmem:[%s7 + $0x8] sm:$0xff]
  %v1740 = vld [vmem:[%s8] sm:$0x1]
  %v1742 = vlaneseq
  %v1743 = vshrl.u32 %v1742, 7
  %v1744 = vsub.s32 0, %v1743
  %v1745 = vrot.slane %v1740, %v1744
  %vm1747 = vcmask 130048
  %v1749 = vsel %vm1747, %v1706, 0
  %v1752 = vsel %vm1747, %v1707, 0
  %v1755 = vsel %vm1747, %v1708, 0
  %v1758 = vsel %vm1747, %v1709, 0
  %v1761 = vsel %vm1747, %v1710, 0
  %v1764 = vsel %vm1747, %v1711, 0
  %v1767 = vsel %vm1747, %v1712, 0
  %v1770 = vsel %vm1747, %v1713, 0
  %v1773 = vsel %vm1747, %v1714, 0
  %v1776 = vsel %vm1747, %v1715, 0
  %v1779 = vsel %vm1747, %v1716, 0
  %v1782 = vsel %vm1747, %v1717, 0
  %v1785 = vsel %vm1747, %v1718, 0
  %v1788 = vsel %vm1747, %v1719, 0
  %v1791 = vsel %vm1747, %v1720, 0
  %v1794 = vsel %vm1747, %v1721, 0
  %v1797 = vsel %vm1747, %v1722, 0
  %v1800 = vsel %vm1747, %v1723, 0
  %v1803 = vsel %vm1747, %v1724, 0
  %v1806 = vsel %vm1747, %v1725, 0
  %v1809 = vsel %vm1747, %v1726, 0
  %v1812 = vsel %vm1747, %v1727, 0
  %v1815 = vsel %vm1747, %v1728, 0
  %v1818 = vsel %vm1747, %v1729, 0
  %v1821 = vsel %vm1747, %v1730, 0
  %v1824 = vsel %vm1747, %v1731, 0
  %v1827 = vsel %vm1747, %v1732, 0
  %v1830 = vsel %vm1747, %v1733, 0
  %v1833 = vsel %vm1747, %v1734, 0
  %v1836 = vsel %vm1747, %v1735, 0
  %v1839 = vsel %vm1747, %v1736, 0
  %v1842 = vsel %vm1747, %v1737, 0
  %1844 = vmatprep.subr.mxu0 0.0
  %1845 = vmatpush1.msra.mxu0 0.0
  %1846 = vmatprep.subr.mxu0 0.0
  %1847 = vmatpush1.msra.mxu0 0.0
  %1848 = vmatprep.subr.mxu0 0.0
  %1849 = vmatpush1.msra.mxu0 0.0
  %1850 = vmatprep.subr.mxu0 0.0
  %1851 = vmatpush1.msra.mxu0 0.0
  %1852 = vmatprep.subr.mxu0 0.0
  %1853 = vmatpush1.msra.mxu0 0.0
  %1854 = vmatprep.subr.mxu0 0.0
  %1855 = vmatpush1.msra.mxu0 0.0
  %1856 = vmatprep.subr.mxu0 0.0
  %1857 = vmatpush1.msra.mxu0 0.0
  %1858 = vmatprep.subr.mxu0 0.0
  %1859 = vmatpush1.msra.mxu0 0.0
  %1860 = vmatprep.subr.mxu0 0.0
  %1861 = vmatpush1.msra.mxu0 0.0
  %1862 = vmatprep.subr.mxu0 0.0
  %1863 = vmatpush1.msra.mxu0 0.0
  %1864 = vmatprep.subr.mxu0 0.0
  %1865 = vmatpush1.msra.mxu0 0.0
  %1866 = vmatprep.subr.mxu0 0.0
  %1867 = vmatpush1.msra.mxu0 0.0
  %1868 = vmatprep.subr.mxu0 0.0
  %1869 = vmatpush1.msra.mxu0 0.0
  %1870 = vmatprep.subr.mxu0 0.0
  %1871 = vmatpush1.msra.mxu0 0.0
  %1872 = vmatprep.subr.mxu0 0.0
  %1873 = vmatpush1.msra.mxu0 %v1739
  %1874 = vmatprep.subr.mxu0 0.0
  %1875 = vmatpush1.msra.mxu0 %v1738
  %1876 = vmatprep.subr.mxu0 0.0
  %1877 = vmatpush2.msra.mxu0 0.0
  %1878 = vmatprep.subr.mxu0 0.0
  %1879 = vmatpush2.msra.mxu0 0.0
  %1880 = vmatprep.subr.mxu0 0.0
  %1881 = vmatpush2.msra.mxu0 0.0
  %1882 = vmatprep.subr.mxu0 0.0
  %1883 = vmatpush2.msra.mxu0 0.0
  %1884 = vmatprep.subr.mxu0 0.0
  %1885 = vmatpush2.msra.mxu0 0.0
  %1886 = vmatprep.subr.mxu0 0.0
  %1887 = vmatpush2.msra.mxu0 0.0
  %1888 = vmatprep.subr.mxu0 0.0
  %1889 = vmatpush2.msra.mxu0 0.0
  %1890 = vmatprep.subr.mxu0 0.0
  %1891 = vmatpush2.msra.mxu0 0.0
  %1892 = vmatprep.subr.mxu0 0.0
  %1893 = vmatpush2.msra.mxu0 0.0
  %1894 = vmatprep.subr.mxu0 0.0
  %1895 = vmatpush2.msra.mxu0 0.0
  %1896 = vmatprep.subr.mxu0 0.0
  %1897 = vmatpush2.msra.mxu0 0.0
  %1898 = vmatprep.subr.mxu0 0.0
  %1899 = vmatpush2.msra.mxu0 0.0
  %1900 = vmatprep.subr.mxu0 0.0
  %1901 = vmatpush2.msra.mxu0 0.0
  %1902 = vmatprep.subr.mxu0 0.0
  %1903 = vmatpush2.msra.mxu0 0.0
  %1904 = vmatprep.subr.mxu0 0.0
  %1905 = vmatpush2.msra.mxu0 0.0
  %1906 = vmatprep.subr.mxu0 0.0
  %1907 = vmatpush2.msra.mxu0 0.0
  %1908 = vmatprep.mubr.f32.mxu0 0.0
  %1909 = vmatmul.mubr.f32.gmra.mxu0 %v1749
  %v1910 = vpop.f32.mrf.mxu0
  %v1911 = vadd.f32 %v1745, %v1910
  %v1912 = vpop.f32.mrf.mxu0
  %1913 = vmatprep.mubr.f32.mxu0 0.0
  %1914 = vmatmul.mubr.f32.gmra.mxu0 %v1752
  %v1915 = vpop.f32.mrf.mxu0
  %v1916 = vadd.f32 %v1745, %v1915
  %v1917 = vpop.f32.mrf.mxu0
  %1918 = vmatprep.mubr.f32.mxu0 0.0
  %1919 = vmatmul.mubr.f32.gmra.mxu0 %v1755
  %v1920 = vpop.f32.mrf.mxu0
  %v1921 = vadd.f32 %v1745, %v1920
  %v1922 = vpop.f32.mrf.mxu0
  %1923 = vmatprep.mubr.f32.mxu0 0.0
  %1924 = vmatmul.mubr.f32.gmra.mxu0 %v1758
  %v1925 = vpop.f32.mrf.mxu0
  %v1926 = vadd.f32 %v1745, %v1925
  %v1927 = vpop.f32.mrf.mxu0
  %1928 = vmatprep.mubr.f32.mxu0 0.0
  %1929 = vmatmul.mubr.f32.gmra.mxu0 %v1761
  %v1930 = vpop.f32.mrf.mxu0
  %v1931 = vadd.f32 %v1745, %v1930
  %v1932 = vpop.f32.mrf.mxu0
  %1933 = vmatprep.mubr.f32.mxu0 0.0
  %1934 = vmatmul.mubr.f32.gmra.mxu0 %v1764
  %v1935 = vpop.f32.mrf.mxu0
  %v1936 = vadd.f32 %v1745, %v1935
  %v1937 = vpop.f32.mrf.mxu0
  %1938 = vmatprep.mubr.f32.mxu0 0.0
  %1939 = vmatmul.mubr.f32.gmra.mxu0 %v1767
  %v1940 = vpop.f32.mrf.mxu0
  %v1941 = vadd.f32 %v1745, %v1940
  %v1942 = vpop.f32.mrf.mxu0
  %1943 = vmatprep.mubr.f32.mxu0 0.0
  %1944 = vmatmul.mubr.f32.gmra.mxu0 %v1770
  %v1945 = vpop.f32.mrf.mxu0
  %v1946 = vadd.f32 %v1745, %v1945
  %v1947 = vpop.f32.mrf.mxu0
  %1948 = vmatprep.mubr.f32.mxu0 0.0
  %1949 = vmatmul.mubr.f32.gmra.mxu0 %v1773
  %v1950 = vpop.f32.mrf.mxu0
  %v1951 = vadd.f32 %v1745, %v1950
  %v1952 = vpop.f32.mrf.mxu0
  %1953 = vmatprep.mubr.f32.mxu0 0.0
  %1954 = vmatmul.mubr.f32.gmra.mxu0 %v1776
  %v1955 = vpop.f32.mrf.mxu0
  %v1956 = vadd.f32 %v1745, %v1955
  %v1957 = vpop.f32.mrf.mxu0
  %1958 = vmatprep.mubr.f32.mxu0 0.0
  %1959 = vmatmul.mubr.f32.gmra.mxu0 %v1779
  %v1960 = vpop.f32.mrf.mxu0
  %v1961 = vadd.f32 %v1745, %v1960
  %v1962 = vpop.f32.mrf.mxu0
  %1963 = vmatprep.mubr.f32.mxu0 0.0
  %1964 = vmatmul.mubr.f32.gmra.mxu0 %v1782
  %v1965 = vpop.f32.mrf.mxu0
  %v1966 = vadd.f32 %v1745, %v1965
  %v1967 = vpop.f32.mrf.mxu0
  %1968 = vmatprep.mubr.f32.mxu0 0.0
  %1969 = vmatmul.mubr.f32.gmra.mxu0 %v1785
  %v1970 = vpop.f32.mrf.mxu0
  %v1971 = vadd.f32 %v1745, %v1970
  %v1972 = vpop.f32.mrf.mxu0
  %1973 = vmatprep.mubr.f32.mxu0 0.0
  %1974 = vmatmul.mubr.f32.gmra.mxu0 %v1788
  %v1975 = vpop.f32.mrf.mxu0
  %v1976 = vadd.f32 %v1745, %v1975
  %v1977 = vpop.f32.mrf.mxu0
  %1978 = vmatprep.mubr.f32.mxu0 0.0
  %1979 = vmatmul.mubr.f32.gmra.mxu0 %v1791
  %v1980 = vpop.f32.mrf.mxu0
  %v1981 = vadd.f32 %v1745, %v1980
  %v1982 = vpop.f32.mrf.mxu0
  %1983 = vmatprep.mubr.f32.mxu0 0.0
  %1984 = vmatmul.mubr.f32.gmra.mxu0 %v1794
  %v1985 = vpop.f32.mrf.mxu0
  %v1986 = vadd.f32 %v1745, %v1985
  %v1987 = vpop.f32.mrf.mxu0
  %1988 = vmatprep.mubr.f32.mxu0 0.0
  %1989 = vmatmul.mubr.f32.gmra.mxu0 %v1797
  %v1990 = vpop.f32.mrf.mxu0
  %v1991 = vadd.f32 %v1745, %v1990
  %v1992 = vpop.f32.mrf.mxu0
  %1993 = vmatprep.mubr.f32.mxu0 0.0
  %1994 = vmatmul.mubr.f32.gmra.mxu0 %v1800
  %v1995 = vpop.f32.mrf.mxu0
  %v1996 = vadd.f32 %v1745, %v1995
  %v1997 = vpop.f32.mrf.mxu0
  %1998 = vmatprep.mubr.f32.mxu0 0.0
  %1999 = vmatmul.mubr.f32.gmra.mxu0 %v1803
  %v2000 = vpop.f32.mrf.mxu0
  %v2001 = vadd.f32 %v1745, %v2000
  %v2002 = vpop.f32.mrf.mxu0
  %2003 = vmatprep.mubr.f32.mxu0 0.0
  %2004 = vmatmul.mubr.f32.gmra.mxu0 %v1806
  %v2005 = vpop.f32.mrf.mxu0
  %v2006 = vadd.f32 %v1745, %v2005
  %v2007 = vpop.f32.mrf.mxu0
  %2008 = vmatprep.mubr.f32.mxu0 0.0
  %2009 = vmatmul.mubr.f32.gmra.mxu0 %v1809
  %v2010 = vpop.f32.mrf.mxu0
  %v2011 = vadd.f32 %v1745, %v2010
  %v2012 = vpop.f32.mrf.mxu0
  %2013 = vmatprep.mubr.f32.mxu0 0.0
  %2014 = vmatmul.mubr.f32.gmra.mxu0 %v1812
  %v2015 = vpop.f32.mrf.mxu0
  %v2016 = vadd.f32 %v1745, %v2015
  %v2017 = vpop.f32.mrf.mxu0
  %2018 = vmatprep.mubr.f32.mxu0 0.0
  %2019 = vmatmul.mubr.f32.gmra.mxu0 %v1815
  %v2020 = vpop.f32.mrf.mxu0
  %v2021 = vadd.f32 %v1745, %v2020
  %v2022 = vpop.f32.mrf.mxu0
  %2023 = vmatprep.mubr.f32.mxu0 0.0
  %2024 = vmatmul.mubr.f32.gmra.mxu0 %v1818
  %v2025 = vpop.f32.mrf.mxu0
  %v2026 = vadd.f32 %v1745, %v2025
  %v2027 = vpop.f32.mrf.mxu0
  %2028 = vmatprep.mubr.f32.mxu0 0.0
  %2029 = vmatmul.mubr.f32.gmra.mxu0 %v1821
  %v2030 = vpop.f32.mrf.mxu0
  %v2031 = vadd.f32 %v1745, %v2030
  %v2032 = vpop.f32.mrf.mxu0
  %2033 = vmatprep.mubr.f32.mxu0 0.0
  %2034 = vmatmul.mubr.f32.gmra.mxu0 %v1824
  %v2035 = vpop.f32.mrf.mxu0
  %v2036 = vadd.f32 %v1745, %v2035
  %v2037 = vpop.f32.mrf.mxu0
  %2038 = vmatprep.mubr.f32.mxu0 0.0
  %2039 = vmatmul.mubr.f32.gmra.mxu0 %v1827
  %v2040 = vpop.f32.mrf.mxu0
  %v2041 = vadd.f32 %v1745, %v2040
  %v2042 = vpop.f32.mrf.mxu0
  %2043 = vmatprep.mubr.f32.mxu0 0.0
  %2044 = vmatmul.mubr.f32.gmra.mxu0 %v1830
  %v2045 = vpop.f32.mrf.mxu0
  %v2046 = vadd.f32 %v1745, %v2045
  %v2047 = vpop.f32.mrf.mxu0
  %2048 = vmatprep.mubr.f32.mxu0 0.0
  %2049 = vmatmul.mubr.f32.gmra.mxu0 %v1833
  %v2050 = vpop.f32.mrf.mxu0
  %v2051 = vadd.f32 %v1745, %v2050
  %v2052 = vpop.f32.mrf.mxu0
  %2053 = vmatprep.mubr.f32.mxu0 0.0
  %2054 = vmatmul.mubr.f32.gmra.mxu0 %v1836
  %v2055 = vpop.f32.mrf.mxu0
  %v2056 = vadd.f32 %v1745, %v2055
  %v2057 = vpop.f32.mrf.mxu0
  %2058 = vmatprep.mubr.f32.mxu0 0.0
  %2059 = vmatmul.mubr.f32.gmra.mxu0 %v1839
  %v2060 = vpop.f32.mrf.mxu0
  %v2061 = vadd.f32 %v1745, %v2060
  %v2062 = vpop.f32.mrf.mxu0
  %2063 = vmatprep.mubr.f32.mxu0 0.0
  %2064 = vmatmul.mubr.f32.gmra.mxu0 %v1842
  %v2065 = vpop.f32.mrf.mxu0
  %v2066 = vadd.f32 %v1745, %v2065
  %v2067 = vpop.f32.mrf.mxu0
  %2068 = vdwg.mxu0
  %2069 = vmax.xlane.f32.xlu0 %v1911
  %v2070 = vpop.xlane.xlu0 %2069
  %2071 = vmax.xlane.f32.xlu0 %v1916
  %v2072 = vpop.xlane.xlu0 %2071
  %2073 = vmax.xlane.f32.xlu0 %v1921
  %v2074 = vpop.xlane.xlu0 %2073
  %2075 = vmax.xlane.f32.xlu0 %v1926
  %v2076 = vpop.xlane.xlu0 %2075
  %2077 = vmax.xlane.f32.xlu0 %v1931
  %v2078 = vpop.xlane.xlu0 %2077
  %2079 = vmax.xlane.f32.xlu0 %v1936
  %v2080 = vpop.xlane.xlu0 %2079
  %2081 = vmax.xlane.f32.xlu0 %v1941
  %v2082 = vpop.xlane.xlu0 %2081
  %2083 = vmax.xlane.f32.xlu0 %v1946
  %v2084 = vpop.xlane.xlu0 %2083
  %2085 = vmax.xlane.f32.xlu0 %v1951
  %v2086 = vpop.xlane.xlu0 %2085
  %2087 = vmax.xlane.f32.xlu0 %v1956
  %v2088 = vpop.xlane.xlu0 %2087
  %2089 = vmax.xlane.f32.xlu0 %v1961
  %v2090 = vpop.xlane.xlu0 %2089
  %2091 = vmax.xlane.f32.xlu0 %v1966
  %v2092 = vpop.xlane.xlu0 %2091
  %2093 = vmax.xlane.f32.xlu0 %v1971
  %v2094 = vpop.xlane.xlu0 %2093
  %2095 = vmax.xlane.f32.xlu0 %v1976
  %v2096 = vpop.xlane.xlu0 %2095
  %2097 = vmax.xlane.f32.xlu0 %v1981
  %v2098 = vpop.xlane.xlu0 %2097
  %2099 = vmax.xlane.f32.xlu0 %v1986
  %v2100 = vpop.xlane.xlu0 %2099
  %2101 = vmax.xlane.f32.xlu0 %v1991
  %v2102 = vpop.xlane.xlu0 %2101
  %2103 = vmax.xlane.f32.xlu0 %v1996
  %v2104 = vpop.xlane.xlu0 %2103
  %2105 = vmax.xlane.f32.xlu0 %v2001
  %v2106 = vpop.xlane.xlu0 %2105
  %2107 = vmax.xlane.f32.xlu0 %v2006
  %v2108 = vpop.xlane.xlu0 %2107
  %2109 = vmax.xlane.f32.xlu0 %v2011
  %v2110 = vpop.xlane.xlu0 %2109
  %2111 = vmax.xlane.f32.xlu0 %v2016
  %v2112 = vpop.xlane.xlu0 %2111
  %2113 = vmax.xlane.f32.xlu0 %v2021
  %v2114 = vpop.xlane.xlu0 %2113
  %2115 = vmax.xlane.f32.xlu0 %v2026
  %v2116 = vpop.xlane.xlu0 %2115
  %2117 = vmax.xlane.f32.xlu0 %v2031
  %v2118 = vpop.xlane.xlu0 %2117
  %2119 = vmax.xlane.f32.xlu0 %v2036
  %v2120 = vpop.xlane.xlu0 %2119
  %2121 = vmax.xlane.f32.xlu0 %v2041
  %v2122 = vpop.xlane.xlu0 %2121
  %2123 = vmax.xlane.f32.xlu0 %v2046
  %v2124 = vpop.xlane.xlu0 %2123
  %2125 = vmax.xlane.f32.xlu0 %v2051
  %v2126 = vpop.xlane.xlu0 %2125
  %2127 = vmax.xlane.f32.xlu0 %v2056
  %v2128 = vpop.xlane.xlu0 %2127
  %2129 = vmax.xlane.f32.xlu0 %v2061
  %v2130 = vpop.xlane.xlu0 %2129
  %2131 = vmax.xlane.f32.xlu0 %v2066
  %v2132 = vpop.xlane.xlu0 %2131
  %v2133 = vsub.f32 %v1911, %v2070
  %v2134 = vsub.f32 %v1916, %v2072
  %v2135 = vsub.f32 %v1921, %v2074
  %v2136 = vsub.f32 %v1926, %v2076
  %v2137 = vsub.f32 %v1931, %v2078
  %v2138 = vsub.f32 %v1936, %v2080
  %v2139 = vsub.f32 %v1941, %v2082
  %v2140 = vsub.f32 %v1946, %v2084
  %v2141 = vsub.f32 %v1951, %v2086
  %v2142 = vsub.f32 %v1956, %v2088
  %v2143 = vsub.f32 %v1961, %v2090
  %v2144 = vsub.f32 %v1966, %v2092
  %v2145 = vsub.f32 %v1971, %v2094
  %v2146 = vsub.f32 %v1976, %v2096
  %v2147 = vsub.f32 %v1981, %v2098
  %v2148 = vsub.f32 %v1986, %v2100
  %v2149 = vsub.f32 %v1991, %v2102
  %v2150 = vsub.f32 %v1996, %v2104
  %v2151 = vsub.f32 %v2001, %v2106
  %v2152 = vsub.f32 %v2006, %v2108
  %v2153 = vsub.f32 %v2011, %v2110
  %v2154 = vsub.f32 %v2016, %v2112
  %v2155 = vsub.f32 %v2021, %v2114
  %v2156 = vsub.f32 %v2026, %v2116
  %v2157 = vsub.f32 %v2031, %v2118
  %v2158 = vsub.f32 %v2036, %v2120
  %v2159 = vsub.f32 %v2041, %v2122
  %v2160 = vsub.f32 %v2046, %v2124
  %v2161 = vsub.f32 %v2051, %v2126
  %v2162 = vsub.f32 %v2056, %v2128
  %v2163 = vsub.f32 %v2061, %v2130
  %v2164 = vsub.f32 %v2066, %v2132
  %v2165 = vmul.f32 %v2133, 1.442695
  %v2166 = vpow.pop %v2165
  %v2167 = vmul.f32 %v2134, 1.442695
  %v2168 = vpow.pop %v2167
  %v2169 = vmul.f32 %v2135, 1.442695
  %v2170 = vpow.pop %v2169
  %v2171 = vmul.f32 %v2136, 1.442695
  %v2172 = vpow.pop %v2171
  %v2173 = vmul.f32 %v2137, 1.442695
  %v2174 = vpow.pop %v2173
  %v2175 = vmul.f32 %v2138, 1.442695
  %v2176 = vpow.pop %v2175
  %v2177 = vmul.f32 %v2139, 1.442695
  %v2178 = vpow.pop %v2177
  %v2179 = vmul.f32 %v2140, 1.442695
  %v2180 = vpow.pop %v2179
  %v2181 = vmul.f32 %v2141, 1.442695
  %v2182 = vpow.pop %v2181
  %v2183 = vmul.f32 %v2142, 1.442695
  %v2184 = vpow.pop %v2183
  %v2185 = vmul.f32 %v2143, 1.442695
  %v2186 = vpow.pop %v2185
  %v2187 = vmul.f32 %v2144, 1.442695
  %v2188 = vpow.pop %v2187
  %v2189 = vmul.f32 %v2145, 1.442695
  %v2190 = vpow.pop %v2189
  %v2191 = vmul.f32 %v2146, 1.442695
  %v2192 = vpow.pop %v2191
  %v2193 = vmul.f32 %v2147, 1.442695
  %v2194 = vpow.pop %v2193
  %v2195 = vmul.f32 %v2148, 1.442695
  %v2196 = vpow.pop %v2195
  %v2197 = vmul.f32 %v2149, 1.442695
  %v2198 = vpow.pop %v2197
  %v2199 = vmul.f32 %v2150, 1.442695
  %v2200 = vpow.pop %v2199
  %v2201 = vmul.f32 %v2151, 1.442695
  %v2202 = vpow.pop %v2201
  %v2203 = vmul.f32 %v2152, 1.442695
  %v2204 = vpow.pop %v2203
  %v2205 = vmul.f32 %v2153, 1.442695
  %v2206 = vpow.pop %v2205
  %v2207 = vmul.f32 %v2154, 1.442695
  %v2208 = vpow.pop %v2207
  %v2209 = vmul.f32 %v2155, 1.442695
  %v2210 = vpow.pop %v2209
  %v2211 = vmul.f32 %v2156, 1.442695
  %v2212 = vpow.pop %v2211
  %v2213 = vmul.f32 %v2157, 1.442695
  %v2214 = vpow.pop %v2213
  %v2215 = vmul.f32 %v2158, 1.442695
  %v2216 = vpow.pop %v2215
  %v2217 = vmul.f32 %v2159, 1.442695
  %v2218 = vpow.pop %v2217
  %v2219 = vmul.f32 %v2160, 1.442695
  %v2220 = vpow.pop %v2219
  %v2221 = vmul.f32 %v2161, 1.442695
  %v2222 = vpow.pop %v2221
  %v2223 = vmul.f32 %v2162, 1.442695
  %v2224 = vpow.pop %v2223
  %v2225 = vmul.f32 %v2163, 1.442695
  %v2226 = vpow.pop %v2225
  %v2227 = vmul.f32 %v2164, 1.442695
  %v2228 = vpow.pop %v2227
  %2229 = vadd.xlane.f32.xlu0 %v2166
  %v2230 = vpop.xlane.xlu0 %2229
  %2231 = vadd.xlane.f32.xlu0 %v2168
  %v2232 = vpop.xlane.xlu0 %2231
  %2233 = vadd.xlane.f32.xlu0 %v2170
  %v2234 = vpop.xlane.xlu0 %2233
  %2235 = vadd.xlane.f32.xlu0 %v2172
  %v2236 = vpop.xlane.xlu0 %2235
  %2237 = vadd.xlane.f32.xlu0 %v2174
  %v2238 = vpop.xlane.xlu0 %2237
  %2239 = vadd.xlane.f32.xlu0 %v2176
  %v2240 = vpop.xlane.xlu0 %2239
  %2241 = vadd.xlane.f32.xlu0 %v2178
  %v2242 = vpop.xlane.xlu0 %2241
  %2243 = vadd.xlane.f32.xlu0 %v2180
  %v2244 = vpop.xlane.xlu0 %2243
  %2245 = vadd.xlane.f32.xlu0 %v2182
  %v2246 = vpop.xlane.xlu0 %2245
  %2247 = vadd.xlane.f32.xlu0 %v2184
  %v2248 = vpop.xlane.xlu0 %2247
  %2249 = vadd.xlane.f32.xlu0 %v2186
  %v2250 = vpop.xlane.xlu0 %2249
  %2251 = vadd.xlane.f32.xlu0 %v2188
  %v2252 = vpop.xlane.xlu0 %2251
  %2253 = vadd.xlane.f32.xlu0 %v2190
  %v2254 = vpop.xlane.xlu0 %2253
  %2255 = vadd.xlane.f32.xlu0 %v2192
  %v2256 = vpop.xlane.xlu0 %2255
  %2257 = vadd.xlane.f32.xlu0 %v2194
  %v2258 = vpop.xlane.xlu0 %2257
  %2259 = vadd.xlane.f32.xlu0 %v2196
  %v2260 = vpop.xlane.xlu0 %2259
  %2261 = vadd.xlane.f32.xlu0 %v2198
  %v2262 = vpop.xlane.xlu0 %2261
  %2263 = vadd.xlane.f32.xlu0 %v2200
  %v2264 = vpop.xlane.xlu0 %2263
  %2265 = vadd.xlane.f32.xlu0 %v2202
  %v2266 = vpop.xlane.xlu0 %2265
  %2267 = vadd.xlane.f32.xlu0 %v2204
  %v2268 = vpop.xlane.xlu0 %2267
  %2269 = vadd.xlane.f32.xlu0 %v2206
  %v2270 = vpop.xlane.xlu0 %2269
  %2271 = vadd.xlane.f32.xlu0 %v2208
  %v2272 = vpop.xlane.xlu0 %2271
  %2273 = vadd.xlane.f32.xlu0 %v2210
  %v2274 = vpop.xlane.xlu0 %2273
  %2275 = vadd.xlane.f32.xlu0 %v2212
  %v2276 = vpop.xlane.xlu0 %2275
  %2277 = vadd.xlane.f32.xlu0 %v2214
  %v2278 = vpop.xlane.xlu0 %2277
  %2279 = vadd.xlane.f32.xlu0 %v2216
  %v2280 = vpop.xlane.xlu0 %2279
  %2281 = vadd.xlane.f32.xlu0 %v2218
  %v2282 = vpop.xlane.xlu0 %2281
  %2283 = vadd.xlane.f32.xlu0 %v2220
  %v2284 = vpop.xlane.xlu0 %2283
  %2285 = vadd.xlane.f32.xlu0 %v2222
  %v2286 = vpop.xlane.xlu0 %2285
  %2287 = vadd.xlane.f32.xlu0 %v2224
  %v2288 = vpop.xlane.xlu0 %2287
  %2289 = vadd.xlane.f32.xlu0 %v2226
  %v2290 = vpop.xlane.xlu0 %2289
  %2291 = vadd.xlane.f32.xlu0 %v2228
  %v2292 = vpop.xlane.xlu0 %2291
  %v2293 = vlog2.pop %v2230
  %v2294 = vmul.f32 %v2293, 0.6931472
  %v2295 = vlog2.pop %v2232
  %v2296 = vmul.f32 %v2295, 0.6931472
  %v2297 = vlog2.pop %v2234
  %v2298 = vmul.f32 %v2297, 0.6931472
  %v2299 = vlog2.pop %v2236
  %v2300 = vmul.f32 %v2299, 0.6931472
  %v2301 = vlog2.pop %v2238
  %v2302 = vmul.f32 %v2301, 0.6931472
  %v2303 = vlog2.pop %v2240
  %v2304 = vmul.f32 %v2303, 0.6931472
  %v2305 = vlog2.pop %v2242
  %v2306 = vmul.f32 %v2305, 0.6931472
  %v2307 = vlog2.pop %v2244
  %v2308 = vmul.f32 %v2307, 0.6931472
  %v2309 = vlog2.pop %v2246
  %v2310 = vmul.f32 %v2309, 0.6931472
  %v2311 = vlog2.pop %v2248
  %v2312 = vmul.f32 %v2311, 0.6931472
  %v2313 = vlog2.pop %v2250
  %v2314 = vmul.f32 %v2313, 0.6931472
  %v2315 = vlog2.pop %v2252
  %v2316 = vmul.f32 %v2315, 0.6931472
  %v2317 = vlog2.pop %v2254
  %v2318 = vmul.f32 %v2317, 0.6931472
  %v2319 = vlog2.pop %v2256
  %v2320 = vmul.f32 %v2319, 0.6931472
  %v2321 = vlog2.pop %v2258
  %v2322 = vmul.f32 %v2321, 0.6931472
  %v2323 = vlog2.pop %v2260
  %v2324 = vmul.f32 %v2323, 0.6931472
  %v2325 = vlog2.pop %v2262
  %v2326 = vmul.f32 %v2325, 0.6931472
  %v2327 = vlog2.pop %v2264
  %v2328 = vmul.f32 %v2327, 0.6931472
  %v2329 = vlog2.pop %v2266
  %v2330 = vmul.f32 %v2329, 0.6931472
  %v2331 = vlog2.pop %v2268
  %v2332 = vmul.f32 %v2331, 0.6931472
  %v2333 = vlog2.pop %v2270
  %v2334 = vmul.f32 %v2333, 0.6931472
  %v2335 = vlog2.pop %v2272
  %v2336 = vmul.f32 %v2335, 0.6931472
  %v2337 = vlog2.pop %v2274
  %v2338 = vmul.f32 %v2337, 0.6931472
  %v2339 = vlog2.pop %v2276
  %v2340 = vmul.f32 %v2339, 0.6931472
  %v2341 = vlog2.pop %v2278
  %v2342 = vmul.f32 %v2341, 0.6931472
  %v2343 = vlog2.pop %v2280
  %v2344 = vmul.f32 %v2343, 0.6931472
  %v2345 = vlog2.pop %v2282
  %v2346 = vmul.f32 %v2345, 0.6931472
  %v2347 = vlog2.pop %v2284
  %v2348 = vmul.f32 %v2347, 0.6931472
  %v2349 = vlog2.pop %v2286
  %v2350 = vmul.f32 %v2349, 0.6931472
  %v2351 = vlog2.pop %v2288
  %v2352 = vmul.f32 %v2351, 0.6931472
  %v2353 = vlog2.pop %v2290
  %v2354 = vmul.f32 %v2353, 0.6931472
  %v2355 = vlog2.pop %v2292
  %v2356 = vmul.f32 %v2355, 0.6931472
  %v2357 = vadd.f32 %v2070, %v2294
  %v2358 = vadd.f32 %v2072, %v2296
  %v2359 = vadd.f32 %v2074, %v2298
  %v2360 = vadd.f32 %v2076, %v2300
  %v2361 = vadd.f32 %v2078, %v2302
  %v2362 = vadd.f32 %v2080, %v2304
  %v2363 = vadd.f32 %v2082, %v2306
  %v2364 = vadd.f32 %v2084, %v2308
  %v2365 = vadd.f32 %v2086, %v2310
  %v2366 = vadd.f32 %v2088, %v2312
  %v2367 = vadd.f32 %v2090, %v2314
  %v2368 = vadd.f32 %v2092, %v2316
  %v2369 = vadd.f32 %v2094, %v2318
  %v2370 = vadd.f32 %v2096, %v2320
  %v2371 = vadd.f32 %v2098, %v2322
  %v2372 = vadd.f32 %v2100, %v2324
  %v2373 = vadd.f32 %v2102, %v2326
  %v2374 = vadd.f32 %v2104, %v2328
  %v2375 = vadd.f32 %v2106, %v2330
  %v2376 = vadd.f32 %v2108, %v2332
  %v2377 = vadd.f32 %v2110, %v2334
  %v2378 = vadd.f32 %v2112, %v2336
  %v2379 = vadd.f32 %v2114, %v2338
  %v2380 = vadd.f32 %v2116, %v2340
  %v2381 = vadd.f32 %v2118, %v2342
  %v2382 = vadd.f32 %v2120, %v2344
  %v2383 = vadd.f32 %v2122, %v2346
  %v2384 = vadd.f32 %v2124, %v2348
  %v2385 = vadd.f32 %v2126, %v2350
  %v2386 = vadd.f32 %v2128, %v2352
  %v2387 = vadd.f32 %v2130, %v2354
  %v2388 = vadd.f32 %v2132, %v2356
  %v2389 = vsub.f32 %v1911, %v2357
  %v2390 = vsub.f32 %v1916, %v2358
  %v2391 = vsub.f32 %v1921, %v2359
  %v2392 = vsub.f32 %v1926, %v2360
  %v2393 = vsub.f32 %v1931, %v2361
  %v2394 = vsub.f32 %v1936, %v2362
  %v2395 = vsub.f32 %v1941, %v2363
  %v2396 = vsub.f32 %v1946, %v2364
  %v2397 = vsub.f32 %v1951, %v2365
  %v2398 = vsub.f32 %v1956, %v2366
  %v2399 = vsub.f32 %v1961, %v2367
  %v2400 = vsub.f32 %v1966, %v2368
  %v2401 = vsub.f32 %v1971, %v2369
  %v2402 = vsub.f32 %v1976, %v2370
  %v2403 = vsub.f32 %v1981, %v2371
  %v2404 = vsub.f32 %v1986, %v2372
  %v2405 = vsub.f32 %v1991, %v2373
  %v2406 = vsub.f32 %v1996, %v2374
  %v2407 = vsub.f32 %v2001, %v2375
  %v2408 = vsub.f32 %v2006, %v2376
  %v2409 = vsub.f32 %v2011, %v2377
  %v2410 = vsub.f32 %v2016, %v2378
  %v2411 = vsub.f32 %v2021, %v2379
  %v2412 = vsub.f32 %v2026, %v2380
  %v2413 = vsub.f32 %v2031, %v2381
  %v2414 = vsub.f32 %v2036, %v2382
  %v2415 = vsub.f32 %v2041, %v2383
  %v2416 = vsub.f32 %v2046, %v2384
  %v2417 = vsub.f32 %v2051, %v2385
  %v2418 = vsub.f32 %v2056, %v2386
  %v2419 = vsub.f32 %v2061, %v2387
  %v2420 = vsub.f32 %v2066, %v2388
  %2421 = vst [vmem:[%s9] sm:$0xff] %v2389
  %2422 = vst [vmem:[%s9 + $0x8] sm:$0xff] %v2390
  %2423 = vst [vmem:[%s9 + $0x10] sm:$0xff] %v2391
  %2424 = vst [vmem:[%s9 + $0x18] sm:$0xff] %v2392
  %2425 = vst [vmem:[%s9 + $0x20] sm:$0xff] %v2393
  %2426 = vst [vmem:[%s9 + $0x28] sm:$0xff] %v2394
  %2427 = vst [vmem:[%s9 + $0x30] sm:$0xff] %v2395
  %2428 = vst [vmem:[%s9 + $0x38] sm:$0xff] %v2396
  %2429 = vst [vmem:[%s9 + $0x40] sm:$0xff] %v2397
  %2430 = vst [vmem:[%s9 + $0x48] sm:$0xff] %v2398
  %2431 = vst [vmem:[%s9 + $0x50] sm:$0xff] %v2399
  %2432 = vst [vmem:[%s9 + $0x58] sm:$0xff] %v2400
  %2433 = vst [vmem:[%s9 + $0x60] sm:$0xff] %v2401
  %2434 = vst [vmem:[%s9 + $0x68] sm:$0xff] %v2402
  %2435 = vst [vmem:[%s9 + $0x70] sm:$0xff] %v2403
  %2436 = vst [vmem:[%s9 + $0x78] sm:$0xff] %v2404
  %2437 = vst [vmem:[%s9 + $0x80] sm:$0xff] %v2405
  %2438 = vst [vmem:[%s9 + $0x88] sm:$0xff] %v2406
  %2439 = vst [vmem:[%s9 + $0x90] sm:$0xff] %v2407
  %2440 = vst [vmem:[%s9 + $0x98] sm:$0xff] %v2408
  %2441 = vst [vmem:[%s9 + $0xa0] sm:$0xff] %v2409
  %2442 = vst [vmem:[%s9 + $0xa8] sm:$0xff] %v2410
  %2443 = vst [vmem:[%s9 + $0xb0] sm:$0xff] %v2411
  %2444 = vst [vmem:[%s9 + $0xb8] sm:$0xff] %v2412
  %2445 = vst [vmem:[%s9 + $0xc0] sm:$0xff] %v2413
  %2446 = vst [vmem:[%s9 + $0xc8] sm:$0xff] %v2414
  %2447 = vst [vmem:[%s9 + $0xd0] sm:$0xff] %v2415
  %2448 = vst [vmem:[%s9 + $0xd8] sm:$0xff] %v2416
  %2449 = vst [vmem:[%s9 + $0xe0] sm:$0xff] %v2417
  %2450 = vst [vmem:[%s9 + $0xe8] sm:$0xff] %v2418
  %2451 = vst [vmem:[%s9 + $0xf0] sm:$0xff] %v2419
  %2452 = vst [vmem:[%s9 + $0xf8] sm:$0xff] %v2420
  // Predicated region
  $region38: #{gnn_forward.1} parent=0 // pred_check
    _
  $region39: #{gnn_forward.1} parent=0 // pred_check_branch
    %2454 = sbr.rel (0) target = $region41
  $region40: #{gnn_forward.1} parent=0 // pred_region
    _
  $region41: #{gnn_forward.1} parent=0 // pred_fallthru
    _
  // Predicated region
  $region42: #{gnn_forward.1} parent=0 // pred_check
    _
  $region43: #{gnn_forward.1} parent=0 // pred_check_branch
    %2456 = sbr.rel (0) target = $region45
  $region44: #{gnn_forward.1} parent=0 // pred_region
    _
  $region45: #{gnn_forward.1} parent=0 // pred_fallthru
    _

</llo_original>
